<compile_context>
chip_gen: v5e
topology: v5e:2x2
jax: 0.10.0
libtpu: 0.0.40
codegen_flags: <defaults>
</compile_context>

<pallas_src>
import jax
import jax.numpy as jnp
from jax.experimental import pallas as pl
from jax.experimental.pallas import tpu as pltpu


def _round_up(n, m):
    return ((n + m - 1) // m) * m


def _vmem_capacity_bytes():
    try:
        return int(pltpu.get_tpu_info().vmem_capacity_bytes)
    except Exception:
        return 64 << 20  # conservative (v7x per-TensorCore size)


def _choose_batch_tile(B, tb_max):
    """Pick a batch tile: large (amortize step overhead / MXU weight pushes), but
    avoid heavy batch-padding waste, and keep >=2 grid steps for megacore."""
    tb_max = max(int(tb_max), 8)
    B8 = _round_up(B, 8)
    tb = 8
    for cand in (1024, 768, 512, 384, 256, 192, 128, 96, 64, 48, 32, 24, 16, 8):
        if cand > tb_max:
            continue
        padded = _round_up(B8, cand)
        if 3 * (padded - B8) <= B8:          # tolerate at most ~33% padded rows
            tb = cand
            break
    # Split into >=2 grid steps so the "parallel" axis can shard across v7x's two
    # TensorCores whenever the batch is large enough.
    if B8 >= 16 and _round_up(B8, tb) // tb < 2:
        tb = min(tb, _round_up((B8 + 1) // 2, 8))
    return tb


# --------------------------------------------------------------------------- kernels


def _nice_resident_kernel(x_ref, w1_ref, b1_ref, w2_ref, b2_ref, w3_ref, b3_ref,
                          es_ref, z_ref):
    """All L layers for one batch tile; all weights VMEM-resident.

    x_ref : [TB, 2*Dh_p]  packed (za | zb) input tile (f32)
    w1    : [L, Dh_p, H_p] bf16 (conditioning rows)   b1: [L, 1, H_p] f32
    w2    : [L, H_p,  H_p] bf16                       b2: [L, 1, H_p] f32
    w3    : [L, H_p, Dh_p] bf16 (free columns)        b3: [L, 1, Dh_p] f32
    es    : [1, 2*Dh_p] f32  exp(scaling) packed (esa | esb)
    z_ref : [TB, 2*Dh_p]  packed output tile (f32)
    """
    Dh_p = x_ref.shape[1] // 2
    wdt = w1_ref.dtype
    za = x_ref[:, :Dh_p]
    zb = x_ref[:, Dh_p:]
    for l in range(w1_ref.shape[0]):          # statically unrolled (L small, fixed)
        cond = za if l % 2 == 0 else zb
        h = jnp.dot(cond.astype(wdt), w1_ref[l],
                    preferred_element_type=jnp.float32) + b1_ref[l]
        h = jnp.maximum(h, 0.0)
        h = jnp.dot(h.astype(wdt), w2_ref[l],
                    preferred_element_type=jnp.float32) + b2_ref[l]
        h = jnp.maximum(h, 0.0)
        t = jnp.dot(h.astype(wdt), w3_ref[l],
                    preferred_element_type=jnp.float32) + b3_ref[l]
        if l % 2 == 0:                        # even: free dims are the second half
            zb = zb + t
        else:                                 # odd: free dims are the first half
            za = za + t
    z_ref[:, :Dh_p] = (za * es_ref[:, :Dh_p]).astype(z_ref.dtype)
    z_ref[:, Dh_p:] = (zb * es_ref[:, Dh_p:]).astype(z_ref.dtype)


def _nice_stream_kernel(x_ref, w1_ref, b1_ref, w2_ref, b2_ref, w3_ref, b3_ref,
                        es_ref, z_ref, za_scr, zb_scr):
    """One (batch tile, layer) grid step; per-layer weights streamed (double-buffered
    by the pipeline), za/zb carried across the layer axis in VMEM scratch."""
    l = pl.program_id(1)
    Dh_p = za_scr.shape[1]
    wdt = w1_ref.dtype

    @pl.when(l == 0)
    def _():
        za_scr[...] = x_ref[:, :Dh_p]
        zb_scr[...] = x_ref[:, Dh_p:]

    even = (l % 2) == 0
    cond = jnp.where(even, za_scr[...], zb_scr[...])
    h = jnp.maximum(jnp.dot(cond.astype(wdt), w1_ref[0],
                            preferred_element_type=jnp.float32) + b1_ref[0], 0.0)
    h = jnp.maximum(jnp.dot(h.astype(wdt), w2_ref[0],
                            preferred_element_type=jnp.float32) + b2_ref[0], 0.0)
    t = jnp.dot(h.astype(wdt), w3_ref[0],
                preferred_element_type=jnp.float32) + b3_ref[0]

    @pl.when(even)
    def _():
        zb_scr[...] = zb_scr[...] + t

    @pl.when(jnp.logical_not(even))
    def _():
        za_scr[...] = za_scr[...] + t

    @pl.when(l == pl.num_programs(1) - 1)
    def _():
        z_ref[:, :Dh_p] = (za_scr[...] * es_ref[:, :Dh_p]).astype(z_ref.dtype)
        z_ref[:, Dh_p:] = (zb_scr[...] * es_ref[:, Dh_p:]).astype(z_ref.dtype)


# --------------------------------------------------------------------------- wrapper


def preprocess_nice_params(params, weight_dtype=jnp.bfloat16):
    """One-time parameter packing: static half-mask slicing, 128-padding, bf16 cast,
    exp(scaling).  Call once; pass the result to nice_forward on every call."""
    w1, w2, w3 = params["w1"], params["w2"], params["w3"]
    L, D, H = w1.shape
    assert D % 2 == 0, "NICE half-mask kernel assumes an even input_dim"
    Dh = D // 2
    Dh_p = _round_up(Dh, 128)
    H_p = _round_up(H, 128)

    b1 = params["b1"].reshape(L, 1, H)
    b2 = params["b2"].reshape(L, 1, H)
    b3 = params["b3"].reshape(L, 1, D)

    # Only the conditioning rows of W1 and the free columns of W3/b3 matter.
    # Even layers condition on the first half, odd layers on the second half.
    w1c, w3f, b3f = [], [], []
    for l in range(L):
        if l % 2 == 0:
            w1c.append(w1[l][:Dh, :]); w3f.append(w3[l][:, Dh:]); b3f.append(b3[l][:, Dh:])
        else:
            w1c.append(w1[l][Dh:, :]); w3f.append(w3[l][:, :Dh]); b3f.append(b3[l][:, :Dh])
    w1c, w3f, b3f = jnp.stack(w1c), jnp.stack(w3f), jnp.stack(b3f)

    def pad_to(a, tgt):
        return jnp.pad(a, [(0, t - s) for s, t in zip(a.shape, tgt)])

    es = jnp.exp(params["scaling"].reshape(D).astype(jnp.float32))
    es_packed = jnp.zeros((1, 2 * Dh_p), jnp.float32)
    es_packed = es_packed.at[0, :Dh].set(es[:Dh]).at[0, Dh_p:Dh_p + Dh].set(es[Dh:])

    return {
        "w1": pad_to(w1c, (L, Dh_p, H_p)).astype(weight_dtype),
        "b1": pad_to(b1, (L, 1, H_p)).astype(jnp.float32),
        "w2": pad_to(w2, (L, H_p, H_p)).astype(weight_dtype),
        "b2": pad_to(b2, (L, 1, H_p)).astype(jnp.float32),
        "w3": pad_to(w3f, (L, H_p, Dh_p)).astype(weight_dtype),
        "b3": pad_to(b3f, (L, 1, Dh_p)).astype(jnp.float32),
        "es": es_packed,
        "dims": (D, Dh, Dh_p, H_p, L),
    }


def nice_forward(x, packed, *, tb_max=512, force_stream=False):
    """NICE forward pass.  `packed` is the output of preprocess_nice_params."""
    D, Dh, Dh_p, H_p, L = packed["dims"]
    B = x.shape[0]
    assert x.shape[1] == D
    Wp = 2 * Dh_p

    TB = _choose_batch_tile(B, tb_max)
    B_p = _round_up(max(B, TB), TB)
    grid_b = B_p // TB

    # --- VMEM budgeting / path selection -------------------------------------------
    nbytes = lambda a: a.size * a.dtype.itemsize
    io_tile_bytes = 2 * 2 * (TB * Wp * 4)                 # x + z tiles, double-buffered
    resident_fp = (nbytes(packed["w1"]) + nbytes(packed["w2"]) + nbytes(packed["w3"])
                   + nbytes(packed["b1"]) + nbytes(packed["b2"]) + nbytes(packed["b3"])
                   + nbytes(packed["es"]) + io_tile_bytes)
    wd = packed["w1"].dtype.itemsize
    per_layer_w = (Dh_p * H_p + H_p * H_p + H_p * Dh_p) * wd
    per_layer_b = (2 * H_p + Dh_p) * 4
    stream_fp = (2 * (per_layer_w + per_layer_b) + nbytes(packed["es"])
                 + io_tile_bytes + 2 * TB * Dh_p * 4)

    cap = _vmem_capacity_bytes()
    use_stream = force_stream or (resident_fp + (16 << 20) > cap)
    footprint = stream_fp if use_stream else resident_fp
    vmem_limit = int(max(min(footprint + (8 << 20), cap - (8 << 20)), 16 << 20))
    vmem_limit = int(min(vmem_limit, cap))

    # --- pack the input (only when padding is actually required) --------------------
    if (Dh == Dh_p) and (B_p == B):
        xp = x.astype(jnp.float32)                        # no extra HBM pass if f32
    else:
        xp = jnp.zeros((B_p, Wp), jnp.float32)
        xp = xp.at[:B, :Dh].set(x[:, :Dh].astype(jnp.float32))
        xp = xp.at[:B, Dh_p:Dh_p + Dh].set(x[:, Dh:].astype(jnp.float32))

    args = (xp, packed["w1"], packed["b1"], packed["w2"], packed["b2"],
            packed["w3"], packed["b3"], packed["es"])
    out_shape = jax.ShapeDtypeStruct((B_p, Wp), jnp.float32)

    def run_resident(single_buffer_params):
        io_spec = pl.BlockSpec((TB, Wp), lambda b: (b, 0))

        def pspec(shape, imap):
            if single_buffer_params:
                return pl.BlockSpec(shape, imap, pipeline_mode=pl.Buffered(1))
            return pl.BlockSpec(shape, imap)

        in_specs = [io_spec,
                    pspec(packed["w1"].shape, lambda b: (0, 0, 0)),
                    pspec(packed["b1"].shape, lambda b: (0, 0, 0)),
                    pspec(packed["w2"].shape, lambda b: (0, 0, 0)),
                    pspec(packed["b2"].shape, lambda b: (0, 0, 0)),
                    pspec(packed["w3"].shape, lambda b: (0, 0, 0)),
                    pspec(packed["b3"].shape, lambda b: (0, 0, 0)),
                    pspec(packed["es"].shape, lambda b: (0, 0))]
        return pl.pallas_call(
            _nice_resident_kernel,
            out_shape=out_shape,
            grid=(grid_b,),
            in_specs=in_specs,
            out_specs=io_spec,
            compiler_params=pltpu.CompilerParams(
                dimension_semantics=("parallel",),
                vmem_limit_bytes=vmem_limit),
        )(*args)

    def run_stream():
        io_spec = pl.BlockSpec((TB, Wp), lambda b, l: (b, 0))
        lspec = lambda s: pl.BlockSpec((1,) + tuple(s[1:]), lambda b, l: (l, 0, 0))
        return pl.pallas_call(
            _nice_stream_kernel,
            out_shape=out_shape,
            grid=(grid_b, L),
            in_specs=[io_spec,
                      lspec(packed["w1"].shape), lspec(packed["b1"].shape),
                      lspec(packed["w2"].shape), lspec(packed["b2"].shape),
                      lspec(packed["w3"].shape), lspec(packed["b3"].shape),
                      pl.BlockSpec(packed["es"].shape, lambda b, l: (0, 0))],
            out_specs=io_spec,
            scratch_shapes=[pltpu.VMEM((TB, Dh_p), jnp.float32),
                            pltpu.VMEM((TB, Dh_p), jnp.float32)],
            compiler_params=pltpu.CompilerParams(
                dimension_semantics=("parallel", "arbitrary"),
                vmem_limit_bytes=vmem_limit),
        )(*args)

    if use_stream:
        out = run_stream()
    else:
        try:
            out = run_resident(True)       # Buffered(1) resident params
        except Exception:
            out = run_resident(False)      # fallback: default double-buffering

    if (Dh == Dh_p) and (B_p == B):
        z = out
    else:
        z = jnp.concatenate([out[:B, :Dh], out[:B, Dh_p:Dh_p + Dh]], axis=1)
    return z.astype(x.dtype)


# --------------------------------------------------------------------------- reference


def init_nice_params(key, input_dim, hidden_dim, num_layers):
    """Synthetic init matching the PyTorch module: Linear weights ~ N(0, 0.05),
    biases = 0, scaling = 0. Weights stored transposed as [in, out]."""
    D, H, L = input_dim, hidden_dim, num_layers
    k1, k2, k3 = jax.random.split(key, 3)
    return {
        "w1": 0.05 * jax.random.normal(k1, (L, D, H), jnp.float32),
        "b1": jnp.zeros((L, H), jnp.float32),
        "w2": 0.05 * jax.random.normal(k2, (L, H, H), jnp.float32),
        "b2": jnp.zeros((L, H), jnp.float32),
        "w3": 0.05 * jax.random.normal(k3, (L, H, D), jnp.float32),
        "b3": jnp.zeros((L, D), jnp.float32),
        "scaling": jnp.zeros((D,), jnp.float32),
    }


def nice_forward_ref(x, params):
    """Pure-JAX f32 reference mirroring the PyTorch module (mask-multiply form)."""
    z = x.astype(jnp.float32)
    L, D, H = params["w1"].shape
    Dh = D // 2
    for l in range(L):
        m = jnp.zeros((D,), jnp.float32)
        m = m.at[:Dh].set(1.0) if l % 2 == 0 else m.at[Dh:].set(1.0)
        xm = z * m
        h1 = jax.nn.relu(xm @ params["w1"][l] + params["b1"][l])
        h2 = jax.nn.relu(h1 @ params["w2"][l] + params["b2"][l])
        t = (h2 @ params["w3"][l] + params["b3"][l]) * (1.0 - m)
        z = z + t
    return z * jnp.exp(params["scaling"])


if __name__ == "__main__":
    # Small shapes consistent with the module's forward: x is [batch, input_dim].
    batch, input_dim, hidden_dim, num_layers = 8, 16, 32, 4

    key = jax.random.PRNGKey(0)
    kx, kp = jax.random.split(key)
    x = jax.random.normal(kx, (batch, input_dim), jnp.float32)
    params = init_nice_params(kp, input_dim, hidden_dim, num_layers)

    packed = preprocess_nice_params(params)      # one-time preprocessing (hoisted)

    z_ref = nice_forward_ref(x, params)

    # Resident-weights path (default).
    z = jax.block_until_ready(nice_forward(x, packed))
    assert z.shape == (batch, input_dim)
    assert jnp.allclose(z, z_ref, atol=2e-3, rtol=2e-3), "resident-path mismatch"

    # Layer-streaming fallback path (exercised explicitly for correctness).
    z_s = jax.block_until_ready(nice_forward(x, packed, force_stream=True))
    assert jnp.allclose(z_s, z_ref, atol=2e-3, rtol=2e-3), "streaming-path mismatch"

    print("KERNEL_OK")
</pallas_src>

<mosaic_0001>
module attributes {stable_mosaic.version = 11 : i64} {
  func.func @_nice_resident_kernel(%arg0: i32, %arg1: memref<8x256xf32, #tpu.memory_space<vmem>>, %arg2: memref<4x128x128xbf16, #tpu.memory_space<vmem>>, %arg3: memref<4x1x128xf32, #tpu.memory_space<vmem>>, %arg4: memref<4x128x128xbf16, #tpu.memory_space<vmem>>, %arg5: memref<4x1x128xf32, #tpu.memory_space<vmem>>, %arg6: memref<4x128x128xbf16, #tpu.memory_space<vmem>>, %arg7: memref<4x1x128xf32, #tpu.memory_space<vmem>>, %arg8: memref<1x256xf32, #tpu.memory_space<vmem>>, %arg9: memref<8x256xf32, #tpu.memory_space<vmem>>) attributes {dimension_semantics = [#tpu.dimension_semantics<parallel>], iteration_bounds = array<i64: 1>, scalar_prefetch = 0 : i64, scratch_operands = 0 : i64, tpu.core_type = #tpu.core_type<tc>, window_params = [{transform_indices = @transform_0, window_bounds = array<i64: 8, 256>}, {pipeline_mode = #tpu.pipeline_mode<synchronous>, transform_indices = @transform_1, window_bounds = array<i64: 4, 128, 128>}, {pipeline_mode = #tpu.pipeline_mode<synchronous>, transform_indices = @transform_2, window_bounds = array<i64: 4, 1, 128>}, {pipeline_mode = #tpu.pipeline_mode<synchronous>, transform_indices = @transform_3, window_bounds = array<i64: 4, 128, 128>}, {pipeline_mode = #tpu.pipeline_mode<synchronous>, transform_indices = @transform_4, window_bounds = array<i64: 4, 1, 128>}, {pipeline_mode = #tpu.pipeline_mode<synchronous>, transform_indices = @transform_5, window_bounds = array<i64: 4, 128, 128>}, {pipeline_mode = #tpu.pipeline_mode<synchronous>, transform_indices = @transform_6, window_bounds = array<i64: 4, 1, 128>}, {pipeline_mode = #tpu.pipeline_mode<synchronous>, transform_indices = @transform_7, window_bounds = array<i64: 1, 256>}, {transform_indices = @transform_8, window_bounds = array<i64: 8, 256>}]} {
    %c0 = arith.constant 0 : index
    %c0_0 = arith.constant 0 : index
    %0 = vector.load %arg1[%c0, %c0_0] : memref<8x256xf32, #tpu.memory_space<vmem>>, vector<8x128xf32>
    %c0_1 = arith.constant 0 : index
    %c128 = arith.constant 128 : index
    %1 = vector.load %arg1[%c0_1, %c128] : memref<8x256xf32, #tpu.memory_space<vmem>>, vector<8x128xf32>
    %2 = arith.truncf %0 : vector<8x128xf32> to vector<8x128xbf16>
    %c0_2 = arith.constant 0 : index
    %c0_3 = arith.constant 0 : index
    %c0_4 = arith.constant 0 : index
    %3 = vector.load %arg2[%c0_2, %c0_3, %c0_4] : memref<4x128x128xbf16, #tpu.memory_space<vmem>>, vector<1x128x128xbf16>
    %4 = vector.shape_cast %3 : vector<1x128x128xbf16> to vector<128x128xbf16>
    %cst = arith.constant dense<0.000000e+00> : vector<8x128xf32>
    %5 = tpu.matmul %2, %4, %cst {dimension_numbers = #tpu.dot_dimension_numbers<[1], [0], [0], [1], [0, 0, 1, 1], [], []>} : vector<8x128xbf16>, vector<128x128xbf16>, vector<8x128xf32> -> vector<8x128xf32>
    %c0_5 = arith.constant 0 : index
    %c0_6 = arith.constant 0 : index
    %c0_7 = arith.constant 0 : index
    %6 = vector.load %arg3[%c0_5, %c0_6, %c0_7] : memref<4x1x128xf32, #tpu.memory_space<vmem>>, vector<1x1x128xf32>
    %7 = vector.shape_cast %6 : vector<1x1x128xf32> to vector<1x128xf32>
    %8 = vector.broadcast %7 : vector<1x128xf32> to vector<8x128xf32>
    %9 = arith.addf %5, %8 : vector<8x128xf32>
    %cst_8 = arith.constant 0.000000e+00 : f32
    %10 = vector.broadcast %cst_8 : f32 to vector<8x128xf32>
    %11 = arith.maximumf %9, %10 : vector<8x128xf32>
    %12 = arith.truncf %11 : vector<8x128xf32> to vector<8x128xbf16>
    %c0_9 = arith.constant 0 : index
    %c0_10 = arith.constant 0 : index
    %c0_11 = arith.constant 0 : index
    %13 = vector.load %arg4[%c0_9, %c0_10, %c0_11] : memref<4x128x128xbf16, #tpu.memory_space<vmem>>, vector<1x128x128xbf16>
    %14 = vector.shape_cast %13 : vector<1x128x128xbf16> to vector<128x128xbf16>
    %cst_12 = arith.constant dense<0.000000e+00> : vector<8x128xf32>
    %15 = tpu.matmul %12, %14, %cst_12 {dimension_numbers = #tpu.dot_dimension_numbers<[1], [0], [0], [1], [0, 0, 1, 1], [], []>} : vector<8x128xbf16>, vector<128x128xbf16>, vector<8x128xf32> -> vector<8x128xf32>
    %c0_13 = arith.constant 0 : index
    %c0_14 = arith.constant 0 : index
    %c0_15 = arith.constant 0 : index
    %16 = vector.load %arg5[%c0_13, %c0_14, %c0_15] : memref<4x1x128xf32, #tpu.memory_space<vmem>>, vector<1x1x128xf32>
    %17 = vector.shape_cast %16 : vector<1x1x128xf32> to vector<1x128xf32>
    %18 = vector.broadcast %17 : vector<1x128xf32> to vector<8x128xf32>
    %19 = arith.addf %15, %18 : vector<8x128xf32>
    %cst_16 = arith.constant 0.000000e+00 : f32
    %20 = vector.broadcast %cst_16 : f32 to vector<8x128xf32>
    %21 = arith.maximumf %19, %20 : vector<8x128xf32>
    %22 = arith.truncf %21 : vector<8x128xf32> to vector<8x128xbf16>
    %c0_17 = arith.constant 0 : index
    %c0_18 = arith.constant 0 : index
    %c0_19 = arith.constant 0 : index
    %23 = vector.load %arg6[%c0_17, %c0_18, %c0_19] : memref<4x128x128xbf16, #tpu.memory_space<vmem>>, vector<1x128x128xbf16>
    %24 = vector.shape_cast %23 : vector<1x128x128xbf16> to vector<128x128xbf16>
    %cst_20 = arith.constant dense<0.000000e+00> : vector<8x128xf32>
    %25 = tpu.matmul %22, %24, %cst_20 {dimension_numbers = #tpu.dot_dimension_numbers<[1], [0], [0], [1], [0, 0, 1, 1], [], []>} : vector<8x128xbf16>, vector<128x128xbf16>, vector<8x128xf32> -> vector<8x128xf32>
    %c0_21 = arith.constant 0 : index
    %c0_22 = arith.constant 0 : index
    %c0_23 = arith.constant 0 : index
    %26 = vector.load %arg7[%c0_21, %c0_22, %c0_23] : memref<4x1x128xf32, #tpu.memory_space<vmem>>, vector<1x1x128xf32>
    %27 = vector.shape_cast %26 : vector<1x1x128xf32> to vector<1x128xf32>
    %28 = vector.broadcast %27 : vector<1x128xf32> to vector<8x128xf32>
    %29 = arith.addf %25, %28 : vector<8x128xf32>
    %30 = arith.addf %1, %29 : vector<8x128xf32>
    %31 = arith.truncf %30 : vector<8x128xf32> to vector<8x128xbf16>
    %c1 = arith.constant 1 : index
    %c0_24 = arith.constant 0 : index
    %c0_25 = arith.constant 0 : index
    %32 = vector.load %arg2[%c1, %c0_24, %c0_25] : memref<4x128x128xbf16, #tpu.memory_space<vmem>>, vector<1x128x128xbf16>
    %33 = vector.shape_cast %32 : vector<1x128x128xbf16> to vector<128x128xbf16>
    %cst_26 = arith.constant dense<0.000000e+00> : vector<8x128xf32>
    %34 = tpu.matmul %31, %33, %cst_26 {dimension_numbers = #tpu.dot_dimension_numbers<[1], [0], [0], [1], [0, 0, 1, 1], [], []>} : vector<8x128xbf16>, vector<128x128xbf16>, vector<8x128xf32> -> vector<8x128xf32>
    %c1_27 = arith.constant 1 : index
    %c0_28 = arith.constant 0 : index
    %c0_29 = arith.constant 0 : index
    %35 = vector.load %arg3[%c1_27, %c0_28, %c0_29] : memref<4x1x128xf32, #tpu.memory_space<vmem>>, vector<1x1x128xf32>
    %36 = vector.shape_cast %35 : vector<1x1x128xf32> to vector<1x128xf32>
    %37 = vector.broadcast %36 : vector<1x128xf32> to vector<8x128xf32>
    %38 = arith.addf %34, %37 : vector<8x128xf32>
    %cst_30 = arith.constant 0.000000e+00 : f32
    %39 = vector.broadcast %cst_30 : f32 to vector<8x128xf32>
    %40 = arith.maximumf %38, %39 : vector<8x128xf32>
    %41 = arith.truncf %40 : vector<8x128xf32> to vector<8x128xbf16>
    %c1_31 = arith.constant 1 : index
    %c0_32 = arith.constant 0 : index
    %c0_33 = arith.constant 0 : index
    %42 = vector.load %arg4[%c1_31, %c0_32, %c0_33] : memref<4x128x128xbf16, #tpu.memory_space<vmem>>, vector<1x128x128xbf16>
    %43 = vector.shape_cast %42 : vector<1x128x128xbf16> to vector<128x128xbf16>
    %cst_34 = arith.constant dense<0.000000e+00> : vector<8x128xf32>
    %44 = tpu.matmul %41, %43, %cst_34 {dimension_numbers = #tpu.dot_dimension_numbers<[1], [0], [0], [1], [0, 0, 1, 1], [], []>} : vector<8x128xbf16>, vector<128x128xbf16>, vector<8x128xf32> -> vector<8x128xf32>
    %c1_35 = arith.constant 1 : index
    %c0_36 = arith.constant 0 : index
    %c0_37 = arith.constant 0 : index
    %45 = vector.load %arg5[%c1_35, %c0_36, %c0_37] : memref<4x1x128xf32, #tpu.memory_space<vmem>>, vector<1x1x128xf32>
    %46 = vector.shape_cast %45 : vector<1x1x128xf32> to vector<1x128xf32>
    %47 = vector.broadcast %46 : vector<1x128xf32> to vector<8x128xf32>
    %48 = arith.addf %44, %47 : vector<8x128xf32>
    %cst_38 = arith.constant 0.000000e+00 : f32
    %49 = vector.broadcast %cst_38 : f32 to vector<8x128xf32>
    %50 = arith.maximumf %48, %49 : vector<8x128xf32>
    %51 = arith.truncf %50 : vector<8x128xf32> to vector<8x128xbf16>
    %c1_39 = arith.constant 1 : index
    %c0_40 = arith.constant 0 : index
    %c0_41 = arith.constant 0 : index
    %52 = vector.load %arg6[%c1_39, %c0_40, %c0_41] : memref<4x128x128xbf16, #tpu.memory_space<vmem>>, vector<1x128x128xbf16>
    %53 = vector.shape_cast %52 : vector<1x128x128xbf16> to vector<128x128xbf16>
    %cst_42 = arith.constant dense<0.000000e+00> : vector<8x128xf32>
    %54 = tpu.matmul %51, %53, %cst_42 {dimension_numbers = #tpu.dot_dimension_numbers<[1], [0], [0], [1], [0, 0, 1, 1], [], []>} : vector<8x128xbf16>, vector<128x128xbf16>, vector<8x128xf32> -> vector<8x128xf32>
    %c1_43 = arith.constant 1 : index
    %c0_44 = arith.constant 0 : index
    %c0_45 = arith.constant 0 : index
    %55 = vector.load %arg7[%c1_43, %c0_44, %c0_45] : memref<4x1x128xf32, #tpu.memory_space<vmem>>, vector<1x1x128xf32>
    %56 = vector.shape_cast %55 : vector<1x1x128xf32> to vector<1x128xf32>
    %57 = vector.broadcast %56 : vector<1x128xf32> to vector<8x128xf32>
    %58 = arith.addf %54, %57 : vector<8x128xf32>
    %59 = arith.addf %0, %58 : vector<8x128xf32>
    %60 = arith.truncf %59 : vector<8x128xf32> to vector<8x128xbf16>
    %c2 = arith.constant 2 : index
    %c0_46 = arith.constant 0 : index
    %c0_47 = arith.constant 0 : index
    %61 = vector.load %arg2[%c2, %c0_46, %c0_47] : memref<4x128x128xbf16, #tpu.memory_space<vmem>>, vector<1x128x128xbf16>
    %62 = vector.shape_cast %61 : vector<1x128x128xbf16> to vector<128x128xbf16>
    %cst_48 = arith.constant dense<0.000000e+00> : vector<8x128xf32>
    %63 = tpu.matmul %60, %62, %cst_48 {dimension_numbers = #tpu.dot_dimension_numbers<[1], [0], [0], [1], [0, 0, 1, 1], [], []>} : vector<8x128xbf16>, vector<128x128xbf16>, vector<8x128xf32> -> vector<8x128xf32>
    %c2_49 = arith.constant 2 : index
    %c0_50 = arith.constant 0 : index
    %c0_51 = arith.constant 0 : index
    %64 = vector.load %arg3[%c2_49, %c0_50, %c0_51] : memref<4x1x128xf32, #tpu.memory_space<vmem>>, vector<1x1x128xf32>
    %65 = vector.shape_cast %64 : vector<1x1x128xf32> to vector<1x128xf32>
    %66 = vector.broadcast %65 : vector<1x128xf32> to vector<8x128xf32>
    %67 = arith.addf %63, %66 : vector<8x128xf32>
    %cst_52 = arith.constant 0.000000e+00 : f32
    %68 = vector.broadcast %cst_52 : f32 to vector<8x128xf32>
    %69 = arith.maximumf %67, %68 : vector<8x128xf32>
    %70 = arith.truncf %69 : vector<8x128xf32> to vector<8x128xbf16>
    %c2_53 = arith.constant 2 : index
    %c0_54 = arith.constant 0 : index
    %c0_55 = arith.constant 0 : index
    %71 = vector.load %arg4[%c2_53, %c0_54, %c0_55] : memref<4x128x128xbf16, #tpu.memory_space<vmem>>, vector<1x128x128xbf16>
    %72 = vector.shape_cast %71 : vector<1x128x128xbf16> to vector<128x128xbf16>
    %cst_56 = arith.constant dense<0.000000e+00> : vector<8x128xf32>
    %73 = tpu.matmul %70, %72, %cst_56 {dimension_numbers = #tpu.dot_dimension_numbers<[1], [0], [0], [1], [0, 0, 1, 1], [], []>} : vector<8x128xbf16>, vector<128x128xbf16>, vector<8x128xf32> -> vector<8x128xf32>
    %c2_57 = arith.constant 2 : index
    %c0_58 = arith.constant 0 : index
    %c0_59 = arith.constant 0 : index
    %74 = vector.load %arg5[%c2_57, %c0_58, %c0_59] : memref<4x1x128xf32, #tpu.memory_space<vmem>>, vector<1x1x128xf32>
    %75 = vector.shape_cast %74 : vector<1x1x128xf32> to vector<1x128xf32>
    %76 = vector.broadcast %75 : vector<1x128xf32> to vector<8x128xf32>
    %77 = arith.addf %73, %76 : vector<8x128xf32>
    %cst_60 = arith.constant 0.000000e+00 : f32
    %78 = vector.broadcast %cst_60 : f32 to vector<8x128xf32>
    %79 = arith.maximumf %77, %78 : vector<8x128xf32>
    %80 = arith.truncf %79 : vector<8x128xf32> to vector<8x128xbf16>
    %c2_61 = arith.constant 2 : index
    %c0_62 = arith.constant 0 : index
    %c0_63 = arith.constant 0 : index
    %81 = vector.load %arg6[%c2_61, %c0_62, %c0_63] : memref<4x128x128xbf16, #tpu.memory_space<vmem>>, vector<1x128x128xbf16>
    %82 = vector.shape_cast %81 : vector<1x128x128xbf16> to vector<128x128xbf16>
    %cst_64 = arith.constant dense<0.000000e+00> : vector<8x128xf32>
    %83 = tpu.matmul %80, %82, %cst_64 {dimension_numbers = #tpu.dot_dimension_numbers<[1], [0], [0], [1], [0, 0, 1, 1], [], []>} : vector<8x128xbf16>, vector<128x128xbf16>, vector<8x128xf32> -> vector<8x128xf32>
    %c2_65 = arith.constant 2 : index
    %c0_66 = arith.constant 0 : index
    %c0_67 = arith.constant 0 : index
    %84 = vector.load %arg7[%c2_65, %c0_66, %c0_67] : memref<4x1x128xf32, #tpu.memory_space<vmem>>, vector<1x1x128xf32>
    %85 = vector.shape_cast %84 : vector<1x1x128xf32> to vector<1x128xf32>
    %86 = vector.broadcast %85 : vector<1x128xf32> to vector<8x128xf32>
    %87 = arith.addf %83, %86 : vector<8x128xf32>
    %88 = arith.addf %30, %87 : vector<8x128xf32>
    %89 = arith.truncf %88 : vector<8x128xf32> to vector<8x128xbf16>
    %c3 = arith.constant 3 : index
    %c0_68 = arith.constant 0 : index
    %c0_69 = arith.constant 0 : index
    %90 = vector.load %arg2[%c3, %c0_68, %c0_69] : memref<4x128x128xbf16, #tpu.memory_space<vmem>>, vector<1x128x128xbf16>
    %91 = vector.shape_cast %90 : vector<1x128x128xbf16> to vector<128x128xbf16>
    %cst_70 = arith.constant dense<0.000000e+00> : vector<8x128xf32>
    %92 = tpu.matmul %89, %91, %cst_70 {dimension_numbers = #tpu.dot_dimension_numbers<[1], [0], [0], [1], [0, 0, 1, 1], [], []>} : vector<8x128xbf16>, vector<128x128xbf16>, vector<8x128xf32> -> vector<8x128xf32>
    %c3_71 = arith.constant 3 : index
    %c0_72 = arith.constant 0 : index
    %c0_73 = arith.constant 0 : index
    %93 = vector.load %arg3[%c3_71, %c0_72, %c0_73] : memref<4x1x128xf32, #tpu.memory_space<vmem>>, vector<1x1x128xf32>
    %94 = vector.shape_cast %93 : vector<1x1x128xf32> to vector<1x128xf32>
    %95 = vector.broadcast %94 : vector<1x128xf32> to vector<8x128xf32>
    %96 = arith.addf %92, %95 : vector<8x128xf32>
    %cst_74 = arith.constant 0.000000e+00 : f32
    %97 = vector.broadcast %cst_74 : f32 to vector<8x128xf32>
    %98 = arith.maximumf %96, %97 : vector<8x128xf32>
    %99 = arith.truncf %98 : vector<8x128xf32> to vector<8x128xbf16>
    %c3_75 = arith.constant 3 : index
    %c0_76 = arith.constant 0 : index
    %c0_77 = arith.constant 0 : index
    %100 = vector.load %arg4[%c3_75, %c0_76, %c0_77] : memref<4x128x128xbf16, #tpu.memory_space<vmem>>, vector<1x128x128xbf16>
    %101 = vector.shape_cast %100 : vector<1x128x128xbf16> to vector<128x128xbf16>
    %cst_78 = arith.constant dense<0.000000e+00> : vector<8x128xf32>
    %102 = tpu.matmul %99, %101, %cst_78 {dimension_numbers = #tpu.dot_dimension_numbers<[1], [0], [0], [1], [0, 0, 1, 1], [], []>} : vector<8x128xbf16>, vector<128x128xbf16>, vector<8x128xf32> -> vector<8x128xf32>
    %c3_79 = arith.constant 3 : index
    %c0_80 = arith.constant 0 : index
    %c0_81 = arith.constant 0 : index
    %103 = vector.load %arg5[%c3_79, %c0_80, %c0_81] : memref<4x1x128xf32, #tpu.memory_space<vmem>>, vector<1x1x128xf32>
    %104 = vector.shape_cast %103 : vector<1x1x128xf32> to vector<1x128xf32>
    %105 = vector.broadcast %104 : vector<1x128xf32> to vector<8x128xf32>
    %106 = arith.addf %102, %105 : vector<8x128xf32>
    %cst_82 = arith.constant 0.000000e+00 : f32
    %107 = vector.broadcast %cst_82 : f32 to vector<8x128xf32>
    %108 = arith.maximumf %106, %107 : vector<8x128xf32>
    %109 = arith.truncf %108 : vector<8x128xf32> to vector<8x128xbf16>
    %c3_83 = arith.constant 3 : index
    %c0_84 = arith.constant 0 : index
    %c0_85 = arith.constant 0 : index
    %110 = vector.load %arg6[%c3_83, %c0_84, %c0_85] : memref<4x128x128xbf16, #tpu.memory_space<vmem>>, vector<1x128x128xbf16>
    %111 = vector.shape_cast %110 : vector<1x128x128xbf16> to vector<128x128xbf16>
    %cst_86 = arith.constant dense<0.000000e+00> : vector<8x128xf32>
    %112 = tpu.matmul %109, %111, %cst_86 {dimension_numbers = #tpu.dot_dimension_numbers<[1], [0], [0], [1], [0, 0, 1, 1], [], []>} : vector<8x128xbf16>, vector<128x128xbf16>, vector<8x128xf32> -> vector<8x128xf32>
    %c3_87 = arith.constant 3 : index
    %c0_88 = arith.constant 0 : index
    %c0_89 = arith.constant 0 : index
    %113 = vector.load %arg7[%c3_87, %c0_88, %c0_89] : memref<4x1x128xf32, #tpu.memory_space<vmem>>, vector<1x1x128xf32>
    %114 = vector.shape_cast %113 : vector<1x1x128xf32> to vector<1x128xf32>
    %115 = vector.broadcast %114 : vector<1x128xf32> to vector<8x128xf32>
    %116 = arith.addf %112, %115 : vector<8x128xf32>
    %117 = arith.addf %59, %116 : vector<8x128xf32>
    %c0_90 = arith.constant 0 : index
    %c0_91 = arith.constant 0 : index
    %118 = vector.load %arg8[%c0_90, %c0_91] : memref<1x256xf32, #tpu.memory_space<vmem>>, vector<1x128xf32>
    %119 = vector.broadcast %118 : vector<1x128xf32> to vector<8x128xf32>
    %120 = arith.mulf %117, %119 : vector<8x128xf32>
    %c0_92 = arith.constant 0 : index
    %c0_93 = arith.constant 0 : index
    %121 = vector.load %arg9[%c0_92, %c0_93] : memref<8x256xf32, #tpu.memory_space<vmem>>, vector<8x128xf32>
    tpu.vector_store %arg9[%c0_92, %c0_93], %120 {strides = array<i32>} : memref<8x256xf32, #tpu.memory_space<vmem>>, vector<8x128xf32>,
    %c0_94 = arith.constant 0 : index
    %c128_95 = arith.constant 128 : index
    %122 = vector.load %arg8[%c0_94, %c128_95] : memref<1x256xf32, #tpu.memory_space<vmem>>, vector<1x128xf32>
    %123 = vector.broadcast %122 : vector<1x128xf32> to vector<8x128xf32>
    %124 = arith.mulf %88, %123 : vector<8x128xf32>
    %c0_96 = arith.constant 0 : index
    %c128_97 = arith.constant 128 : index
    %125 = vector.load %arg9[%c0_96, %c128_97] : memref<8x256xf32, #tpu.memory_space<vmem>>, vector<8x128xf32>
    tpu.vector_store %arg9[%c0_96, %c128_97], %124 {strides = array<i32>} : memref<8x256xf32, #tpu.memory_space<vmem>>, vector<8x128xf32>,
    return
  }
  func.func @transform_0(%arg0: i32) -> (i32, i32) {
    %c0_i32 = arith.constant 0 : i32
    %c0_i32_0 = arith.constant 0 : i32
    return %arg0, %c0_i32 : i32, i32
  }
  func.func @transform_1(%arg0: i32) -> (i32, i32, i32) {
    %c0_i32 = arith.constant 0 : i32
    %c0_i32_0 = arith.constant 0 : i32
    %c0_i32_1 = arith.constant 0 : i32
    %c0_i32_2 = arith.constant 0 : i32
    return %c0_i32, %c0_i32_0, %c0_i32_1 : i32, i32, i32
  }
  func.func @transform_2(%arg0: i32) -> (i32, i32, i32) {
    %c0_i32 = arith.constant 0 : i32
    %c0_i32_0 = arith.constant 0 : i32
    %c0_i32_1 = arith.constant 0 : i32
    %c0_i32_2 = arith.constant 0 : i32
    return %c0_i32, %c0_i32_0, %c0_i32_1 : i32, i32, i32
  }
  func.func @transform_3(%arg0: i32) -> (i32, i32, i32) {
    %c0_i32 = arith.constant 0 : i32
    %c0_i32_0 = arith.constant 0 : i32
    %c0_i32_1 = arith.constant 0 : i32
    %c0_i32_2 = arith.constant 0 : i32
    return %c0_i32, %c0_i32_0, %c0_i32_1 : i32, i32, i32
  }
  func.func @transform_4(%arg0: i32) -> (i32, i32, i32) {
    %c0_i32 = arith.constant 0 : i32
    %c0_i32_0 = arith.constant 0 : i32
    %c0_i32_1 = arith.constant 0 : i32
    %c0_i32_2 = arith.constant 0 : i32
    return %c0_i32, %c0_i32_0, %c0_i32_1 : i32, i32, i32
  }
  func.func @transform_5(%arg0: i32) -> (i32, i32, i32) {
    %c0_i32 = arith.constant 0 : i32
    %c0_i32_0 = arith.constant 0 : i32
    %c0_i32_1 = arith.constant 0 : i32
    %c0_i32_2 = arith.constant 0 : i32
    return %c0_i32, %c0_i32_0, %c0_i32_1 : i32, i32, i32
  }
  func.func @transform_6(%arg0: i32) -> (i32, i32, i32) {
    %c0_i32 = arith.constant 0 : i32
    %c0_i32_0 = arith.constant 0 : i32
    %c0_i32_1 = arith.constant 0 : i32
    %c0_i32_2 = arith.constant 0 : i32
    return %c0_i32, %c0_i32_0, %c0_i32_1 : i32, i32, i32
  }
  func.func @transform_7(%arg0: i32) -> (i32, i32) {
    %c0_i32 = arith.constant 0 : i32
    %c0_i32_0 = arith.constant 0 : i32
    %c0_i32_1 = arith.constant 0 : i32
    return %c0_i32, %c0_i32_0 : i32, i32
  }
  func.func @transform_8(%arg0: i32) -> (i32, i32) {
    %c0_i32 = arith.constant 0 : i32
    %c0_i32_0 = arith.constant 0 : i32
    return %arg0, %c0_i32 : i32, i32
  }
}

module attributes {stable_mosaic.version = 11 : i64} {
  func.func @_nice_resident_kernel(%arg0: i32, %arg1: memref<8x256xf32, #tpu.memory_space<vmem>>, %arg2: memref<4x128x128xbf16, #tpu.memory_space<vmem>>, %arg3: memref<4x1x128xf32, #tpu.memory_space<vmem>>, %arg4: memref<4x128x128xbf16, #tpu.memory_space<vmem>>, %arg5: memref<4x1x128xf32, #tpu.memory_space<vmem>>, %arg6: memref<4x128x128xbf16, #tpu.memory_space<vmem>>, %arg7: memref<4x1x128xf32, #tpu.memory_space<vmem>>, %arg8: memref<1x256xf32, #tpu.memory_space<vmem>>, %arg9: memref<8x256xf32, #tpu.memory_space<vmem>>) attributes {dimension_semantics = [#tpu.dimension_semantics<parallel>], iteration_bounds = array<i64: 1>, scalar_prefetch = 0 : i64, scratch_operands = 0 : i64, tpu.core_type = #tpu.core_type<tc>, window_params = [{transform_indices = @transform_0, window_bounds = array<i64: 8, 256>}, {pipeline_mode = #tpu.pipeline_mode<synchronous>, transform_indices = @transform_1, window_bounds = array<i64: 4, 128, 128>}, {pipeline_mode = #tpu.pipeline_mode<synchronous>, transform_indices = @transform_2, window_bounds = array<i64: 4, 1, 128>}, {pipeline_mode = #tpu.pipeline_mode<synchronous>, transform_indices = @transform_3, window_bounds = array<i64: 4, 128, 128>}, {pipeline_mode = #tpu.pipeline_mode<synchronous>, transform_indices = @transform_4, window_bounds = array<i64: 4, 1, 128>}, {pipeline_mode = #tpu.pipeline_mode<synchronous>, transform_indices = @transform_5, window_bounds = array<i64: 4, 128, 128>}, {pipeline_mode = #tpu.pipeline_mode<synchronous>, transform_indices = @transform_6, window_bounds = array<i64: 4, 1, 128>}, {pipeline_mode = #tpu.pipeline_mode<synchronous>, transform_indices = @transform_7, window_bounds = array<i64: 1, 256>}, {transform_indices = @transform_8, window_bounds = array<i64: 8, 256>}]} {
    %c0 = arith.constant 0 : index
    %c0_0 = arith.constant 0 : index
    %0 = vector.load %arg1[%c0, %c0_0] : memref<8x256xf32, #tpu.memory_space<vmem>>, vector<8x128xf32>
    %c0_1 = arith.constant 0 : index
    %c128 = arith.constant 128 : index
    %1 = vector.load %arg1[%c0_1, %c128] : memref<8x256xf32, #tpu.memory_space<vmem>>, vector<8x128xf32>
    %2 = arith.truncf %0 : vector<8x128xf32> to vector<8x128xbf16>
    %c0_2 = arith.constant 0 : index
    %c0_3 = arith.constant 0 : index
    %c0_4 = arith.constant 0 : index
    %3 = vector.load %arg2[%c0_2, %c0_3, %c0_4] : memref<4x128x128xbf16, #tpu.memory_space<vmem>>, vector<1x128x128xbf16>
    %4 = vector.shape_cast %3 : vector<1x128x128xbf16> to vector<128x128xbf16>
    %cst = arith.constant dense<0.000000e+00> : vector<8x128xf32>
    %5 = tpu.matmul %2, %4, %cst {dimension_numbers = #tpu.dot_dimension_numbers<[1], [0], [0], [1], [0, 0, 1, 1], [], []>} : vector<8x128xbf16>, vector<128x128xbf16>, vector<8x128xf32> -> vector<8x128xf32>
    %c0_5 = arith.constant 0 : index
    %c0_6 = arith.constant 0 : index
    %c0_7 = arith.constant 0 : index
    %6 = vector.load %arg3[%c0_5, %c0_6, %c0_7] : memref<4x1x128xf32, #tpu.memory_space<vmem>>, vector<1x1x128xf32>
    %7 = vector.shape_cast %6 : vector<1x1x128xf32> to vector<1x128xf32>
    %8 = vector.broadcast %7 : vector<1x128xf32> to vector<8x128xf32>
    %9 = arith.addf %5, %8 : vector<8x128xf32>
    %cst_8 = arith.constant 0.000000e+00 : f32
    %10 = vector.broadcast %cst_8 : f32 to vector<8x128xf32>
    %11 = arith.maximumf %9, %10 : vector<8x128xf32>
    %12 = arith.truncf %11 : vector<8x128xf32> to vector<8x128xbf16>
    %c0_9 = arith.constant 0 : index
    %c0_10 = arith.constant 0 : index
    %c0_11 = arith.constant 0 : index
    %13 = vector.load %arg4[%c0_9, %c0_10, %c0_11] : memref<4x128x128xbf16, #tpu.memory_space<vmem>>, vector<1x128x128xbf16>
    %14 = vector.shape_cast %13 : vector<1x128x128xbf16> to vector<128x128xbf16>
    %cst_12 = arith.constant dense<0.000000e+00> : vector<8x128xf32>
    %15 = tpu.matmul %12, %14, %cst_12 {dimension_numbers = #tpu.dot_dimension_numbers<[1], [0], [0], [1], [0, 0, 1, 1], [], []>} : vector<8x128xbf16>, vector<128x128xbf16>, vector<8x128xf32> -> vector<8x128xf32>
    %c0_13 = arith.constant 0 : index
    %c0_14 = arith.constant 0 : index
    %c0_15 = arith.constant 0 : index
    %16 = vector.load %arg5[%c0_13, %c0_14, %c0_15] : memref<4x1x128xf32, #tpu.memory_space<vmem>>, vector<1x1x128xf32>
    %17 = vector.shape_cast %16 : vector<1x1x128xf32> to vector<1x128xf32>
    %18 = vector.broadcast %17 : vector<1x128xf32> to vector<8x128xf32>
    %19 = arith.addf %15, %18 : vector<8x128xf32>
    %cst_16 = arith.constant 0.000000e+00 : f32
    %20 = vector.broadcast %cst_16 : f32 to vector<8x128xf32>
    %21 = arith.maximumf %19, %20 : vector<8x128xf32>
    %22 = arith.truncf %21 : vector<8x128xf32> to vector<8x128xbf16>
    %c0_17 = arith.constant 0 : index
    %c0_18 = arith.constant 0 : index
    %c0_19 = arith.constant 0 : index
    %23 = vector.load %arg6[%c0_17, %c0_18, %c0_19] : memref<4x128x128xbf16, #tpu.memory_space<vmem>>, vector<1x128x128xbf16>
    %24 = vector.shape_cast %23 : vector<1x128x128xbf16> to vector<128x128xbf16>
    %cst_20 = arith.constant dense<0.000000e+00> : vector<8x128xf32>
    %25 = tpu.matmul %22, %24, %cst_20 {dimension_numbers = #tpu.dot_dimension_numbers<[1], [0], [0], [1], [0, 0, 1, 1], [], []>} : vector<8x128xbf16>, vector<128x128xbf16>, vector<8x128xf32> -> vector<8x128xf32>
    %c0_21 = arith.constant 0 : index
    %c0_22 = arith.constant 0 : index
    %c0_23 = arith.constant 0 : index
    %26 = vector.load %arg7[%c0_21, %c0_22, %c0_23] : memref<4x1x128xf32, #tpu.memory_space<vmem>>, vector<1x1x128xf32>
    %27 = vector.shape_cast %26 : vector<1x1x128xf32> to vector<1x128xf32>
    %28 = vector.broadcast %27 : vector<1x128xf32> to vector<8x128xf32>
    %29 = arith.addf %25, %28 : vector<8x128xf32>
    %30 = arith.addf %1, %29 : vector<8x128xf32>
    %31 = arith.truncf %30 : vector<8x128xf32> to vector<8x128xbf16>
    %c1 = arith.constant 1 : index
    %c0_24 = arith.constant 0 : index
    %c0_25 = arith.constant 0 : index
    %32 = vector.load %arg2[%c1, %c0_24, %c0_25] : memref<4x128x128xbf16, #tpu.memory_space<vmem>>, vector<1x128x128xbf16>
    %33 = vector.shape_cast %32 : vector<1x128x128xbf16> to vector<128x128xbf16>
    %cst_26 = arith.constant dense<0.000000e+00> : vector<8x128xf32>
    %34 = tpu.matmul %31, %33, %cst_26 {dimension_numbers = #tpu.dot_dimension_numbers<[1], [0], [0], [1], [0, 0, 1, 1], [], []>} : vector<8x128xbf16>, vector<128x128xbf16>, vector<8x128xf32> -> vector<8x128xf32>
    %c1_27 = arith.constant 1 : index
    %c0_28 = arith.constant 0 : index
    %c0_29 = arith.constant 0 : index
    %35 = vector.load %arg3[%c1_27, %c0_28, %c0_29] : memref<4x1x128xf32, #tpu.memory_space<vmem>>, vector<1x1x128xf32>
    %36 = vector.shape_cast %35 : vector<1x1x128xf32> to vector<1x128xf32>
    %37 = vector.broadcast %36 : vector<1x128xf32> to vector<8x128xf32>
    %38 = arith.addf %34, %37 : vector<8x128xf32>
    %cst_30 = arith.constant 0.000000e+00 : f32
    %39 = vector.broadcast %cst_30 : f32 to vector<8x128xf32>
    %40 = arith.maximumf %38, %39 : vector<8x128xf32>
    %41 = arith.truncf %40 : vector<8x128xf32> to vector<8x128xbf16>
    %c1_31 = arith.constant 1 : index
    %c0_32 = arith.constant 0 : index
    %c0_33 = arith.constant 0 : index
    %42 = vector.load %arg4[%c1_31, %c0_32, %c0_33] : memref<4x128x128xbf16, #tpu.memory_space<vmem>>, vector<1x128x128xbf16>
    %43 = vector.shape_cast %42 : vector<1x128x128xbf16> to vector<128x128xbf16>
    %cst_34 = arith.constant dense<0.000000e+00> : vector<8x128xf32>
    %44 = tpu.matmul %41, %43, %cst_34 {dimension_numbers = #tpu.dot_dimension_numbers<[1], [0], [0], [1], [0, 0, 1, 1], [], []>} : vector<8x128xbf16>, vector<128x128xbf16>, vector<8x128xf32> -> vector<8x128xf32>
    %c1_35 = arith.constant 1 : index
    %c0_36 = arith.constant 0 : index
    %c0_37 = arith.constant 0 : index
    %45 = vector.load %arg5[%c1_35, %c0_36, %c0_37] : memref<4x1x128xf32, #tpu.memory_space<vmem>>, vector<1x1x128xf32>
    %46 = vector.shape_cast %45 : vector<1x1x128xf32> to vector<1x128xf32>
    %47 = vector.broadcast %46 : vector<1x128xf32> to vector<8x128xf32>
    %48 = arith.addf %44, %47 : vector<8x128xf32>
    %cst_38 = arith.constant 0.000000e+00 : f32
    %49 = vector.broadcast %cst_38 : f32 to vector<8x128xf32>
    %50 = arith.maximumf %48, %49 : vector<8x128xf32>
    %51 = arith.truncf %50 : vector<8x128xf32> to vector<8x128xbf16>
    %c1_39 = arith.constant 1 : index
    %c0_40 = arith.constant 0 : index
    %c0_41 = arith.constant 0 : index
    %52 = vector.load %arg6[%c1_39, %c0_40, %c0_41] : memref<4x128x128xbf16, #tpu.memory_space<vmem>>, vector<1x128x128xbf16>
    %53 = vector.shape_cast %52 : vector<1x128x128xbf16> to vector<128x128xbf16>
    %cst_42 = arith.constant dense<0.000000e+00> : vector<8x128xf32>
    %54 = tpu.matmul %51, %53, %cst_42 {dimension_numbers = #tpu.dot_dimension_numbers<[1], [0], [0], [1], [0, 0, 1, 1], [], []>} : vector<8x128xbf16>, vector<128x128xbf16>, vector<8x128xf32> -> vector<8x128xf32>
    %c1_43 = arith.constant 1 : index
    %c0_44 = arith.constant 0 : index
    %c0_45 = arith.constant 0 : index
    %55 = vector.load %arg7[%c1_43, %c0_44, %c0_45] : memref<4x1x128xf32, #tpu.memory_space<vmem>>, vector<1x1x128xf32>
    %56 = vector.shape_cast %55 : vector<1x1x128xf32> to vector<1x128xf32>
    %57 = vector.broadcast %56 : vector<1x128xf32> to vector<8x128xf32>
    %58 = arith.addf %54, %57 : vector<8x128xf32>
    %59 = arith.addf %0, %58 : vector<8x128xf32>
    %60 = arith.truncf %59 : vector<8x128xf32> to vector<8x128xbf16>
    %c2 = arith.constant 2 : index
    %c0_46 = arith.constant 0 : index
    %c0_47 = arith.constant 0 : index
    %61 = vector.load %arg2[%c2, %c0_46, %c0_47] : memref<4x128x128xbf16, #tpu.memory_space<vmem>>, vector<1x128x128xbf16>
    %62 = vector.shape_cast %61 : vector<1x128x128xbf16> to vector<128x128xbf16>
    %cst_48 = arith.constant dense<0.000000e+00> : vector<8x128xf32>
    %63 = tpu.matmul %60, %62, %cst_48 {dimension_numbers = #tpu.dot_dimension_numbers<[1], [0], [0], [1], [0, 0, 1, 1], [], []>} : vector<8x128xbf16>, vector<128x128xbf16>, vector<8x128xf32> -> vector<8x128xf32>
    %c2_49 = arith.constant 2 : index
    %c0_50 = arith.constant 0 : index
    %c0_51 = arith.constant 0 : index
    %64 = vector.load %arg3[%c2_49, %c0_50, %c0_51] : memref<4x1x128xf32, #tpu.memory_space<vmem>>, vector<1x1x128xf32>
    %65 = vector.shape_cast %64 : vector<1x1x128xf32> to vector<1x128xf32>
    %66 = vector.broadcast %65 : vector<1x128xf32> to vector<8x128xf32>
    %67 = arith.addf %63, %66 : vector<8x128xf32>
    %cst_52 = arith.constant 0.000000e+00 : f32
    %68 = vector.broadcast %cst_52 : f32 to vector<8x128xf32>
    %69 = arith.maximumf %67, %68 : vector<8x128xf32>
    %70 = arith.truncf %69 : vector<8x128xf32> to vector<8x128xbf16>
    %c2_53 = arith.constant 2 : index
    %c0_54 = arith.constant 0 : index
    %c0_55 = arith.constant 0 : index
    %71 = vector.load %arg4[%c2_53, %c0_54, %c0_55] : memref<4x128x128xbf16, #tpu.memory_space<vmem>>, vector<1x128x128xbf16>
    %72 = vector.shape_cast %71 : vector<1x128x128xbf16> to vector<128x128xbf16>
    %cst_56 = arith.constant dense<0.000000e+00> : vector<8x128xf32>
    %73 = tpu.matmul %70, %72, %cst_56 {dimension_numbers = #tpu.dot_dimension_numbers<[1], [0], [0], [1], [0, 0, 1, 1], [], []>} : vector<8x128xbf16>, vector<128x128xbf16>, vector<8x128xf32> -> vector<8x128xf32>
    %c2_57 = arith.constant 2 : index
    %c0_58 = arith.constant 0 : index
    %c0_59 = arith.constant 0 : index
    %74 = vector.load %arg5[%c2_57, %c0_58, %c0_59] : memref<4x1x128xf32, #tpu.memory_space<vmem>>, vector<1x1x128xf32>
    %75 = vector.shape_cast %74 : vector<1x1x128xf32> to vector<1x128xf32>
    %76 = vector.broadcast %75 : vector<1x128xf32> to vector<8x128xf32>
    %77 = arith.addf %73, %76 : vector<8x128xf32>
    %cst_60 = arith.constant 0.000000e+00 : f32
    %78 = vector.broadcast %cst_60 : f32 to vector<8x128xf32>
    %79 = arith.maximumf %77, %78 : vector<8x128xf32>
    %80 = arith.truncf %79 : vector<8x128xf32> to vector<8x128xbf16>
    %c2_61 = arith.constant 2 : index
    %c0_62 = arith.constant 0 : index
    %c0_63 = arith.constant 0 : index
    %81 = vector.load %arg6[%c2_61, %c0_62, %c0_63] : memref<4x128x128xbf16, #tpu.memory_space<vmem>>, vector<1x128x128xbf16>
    %82 = vector.shape_cast %81 : vector<1x128x128xbf16> to vector<128x128xbf16>
    %cst_64 = arith.constant dense<0.000000e+00> : vector<8x128xf32>
    %83 = tpu.matmul %80, %82, %cst_64 {dimension_numbers = #tpu.dot_dimension_numbers<[1], [0], [0], [1], [0, 0, 1, 1], [], []>} : vector<8x128xbf16>, vector<128x128xbf16>, vector<8x128xf32> -> vector<8x128xf32>
    %c2_65 = arith.constant 2 : index
    %c0_66 = arith.constant 0 : index
    %c0_67 = arith.constant 0 : index
    %84 = vector.load %arg7[%c2_65, %c0_66, %c0_67] : memref<4x1x128xf32, #tpu.memory_space<vmem>>, vector<1x1x128xf32>
    %85 = vector.shape_cast %84 : vector<1x1x128xf32> to vector<1x128xf32>
    %86 = vector.broadcast %85 : vector<1x128xf32> to vector<8x128xf32>
    %87 = arith.addf %83, %86 : vector<8x128xf32>
    %88 = arith.addf %30, %87 : vector<8x128xf32>
    %89 = arith.truncf %88 : vector<8x128xf32> to vector<8x128xbf16>
    %c3 = arith.constant 3 : index
    %c0_68 = arith.constant 0 : index
    %c0_69 = arith.constant 0 : index
    %90 = vector.load %arg2[%c3, %c0_68, %c0_69] : memref<4x128x128xbf16, #tpu.memory_space<vmem>>, vector<1x128x128xbf16>
    %91 = vector.shape_cast %90 : vector<1x128x128xbf16> to vector<128x128xbf16>
    %cst_70 = arith.constant dense<0.000000e+00> : vector<8x128xf32>
    %92 = tpu.matmul %89, %91, %cst_70 {dimension_numbers = #tpu.dot_dimension_numbers<[1], [0], [0], [1], [0, 0, 1, 1], [], []>} : vector<8x128xbf16>, vector<128x128xbf16>, vector<8x128xf32> -> vector<8x128xf32>
    %c3_71 = arith.constant 3 : index
    %c0_72 = arith.constant 0 : index
    %c0_73 = arith.constant 0 : index
    %93 = vector.load %arg3[%c3_71, %c0_72, %c0_73] : memref<4x1x128xf32, #tpu.memory_space<vmem>>, vector<1x1x128xf32>
    %94 = vector.shape_cast %93 : vector<1x1x128xf32> to vector<1x128xf32>
    %95 = vector.broadcast %94 : vector<1x128xf32> to vector<8x128xf32>
    %96 = arith.addf %92, %95 : vector<8x128xf32>
    %cst_74 = arith.constant 0.000000e+00 : f32
    %97 = vector.broadcast %cst_74 : f32 to vector<8x128xf32>
    %98 = arith.maximumf %96, %97 : vector<8x128xf32>
    %99 = arith.truncf %98 : vector<8x128xf32> to vector<8x128xbf16>
    %c3_75 = arith.constant 3 : index
    %c0_76 = arith.constant 0 : index
    %c0_77 = arith.constant 0 : index
    %100 = vector.load %arg4[%c3_75, %c0_76, %c0_77] : memref<4x128x128xbf16, #tpu.memory_space<vmem>>, vector<1x128x128xbf16>
    %101 = vector.shape_cast %100 : vector<1x128x128xbf16> to vector<128x128xbf16>
    %cst_78 = arith.constant dense<0.000000e+00> : vector<8x128xf32>
    %102 = tpu.matmul %99, %101, %cst_78 {dimension_numbers = #tpu.dot_dimension_numbers<[1], [0], [0], [1], [0, 0, 1, 1], [], []>} : vector<8x128xbf16>, vector<128x128xbf16>, vector<8x128xf32> -> vector<8x128xf32>
    %c3_79 = arith.constant 3 : index
    %c0_80 = arith.constant 0 : index
    %c0_81 = arith.constant 0 : index
    %103 = vector.load %arg5[%c3_79, %c0_80, %c0_81] : memref<4x1x128xf32, #tpu.memory_space<vmem>>, vector<1x1x128xf32>
    %104 = vector.shape_cast %103 : vector<1x1x128xf32> to vector<1x128xf32>
    %105 = vector.broadcast %104 : vector<1x128xf32> to vector<8x128xf32>
    %106 = arith.addf %102, %105 : vector<8x128xf32>
    %cst_82 = arith.constant 0.000000e+00 : f32
    %107 = vector.broadcast %cst_82 : f32 to vector<8x128xf32>
    %108 = arith.maximumf %106, %107 : vector<8x128xf32>
    %109 = arith.truncf %108 : vector<8x128xf32> to vector<8x128xbf16>
    %c3_83 = arith.constant 3 : index
    %c0_84 = arith.constant 0 : index
    %c0_85 = arith.constant 0 : index
    %110 = vector.load %arg6[%c3_83, %c0_84, %c0_85] : memref<4x128x128xbf16, #tpu.memory_space<vmem>>, vector<1x128x128xbf16>
    %111 = vector.shape_cast %110 : vector<1x128x128xbf16> to vector<128x128xbf16>
    %cst_86 = arith.constant dense<0.000000e+00> : vector<8x128xf32>
    %112 = tpu.matmul %109, %111, %cst_86 {dimension_numbers = #tpu.dot_dimension_numbers<[1], [0], [0], [1], [0, 0, 1, 1], [], []>} : vector<8x128xbf16>, vector<128x128xbf16>, vector<8x128xf32> -> vector<8x128xf32>
    %c3_87 = arith.constant 3 : index
    %c0_88 = arith.constant 0 : index
    %c0_89 = arith.constant 0 : index
    %113 = vector.load %arg7[%c3_87, %c0_88, %c0_89] : memref<4x1x128xf32, #tpu.memory_space<vmem>>, vector<1x1x128xf32>
    %114 = vector.shape_cast %113 : vector<1x1x128xf32> to vector<1x128xf32>
    %115 = vector.broadcast %114 : vector<1x128xf32> to vector<8x128xf32>
    %116 = arith.addf %112, %115 : vector<8x128xf32>
    %117 = arith.addf %59, %116 : vector<8x128xf32>
    %c0_90 = arith.constant 0 : index
    %c0_91 = arith.constant 0 : index
    %118 = vector.load %arg8[%c0_90, %c0_91] : memref<1x256xf32, #tpu.memory_space<vmem>>, vector<1x128xf32>
    %119 = vector.broadcast %118 : vector<1x128xf32> to vector<8x128xf32>
    %120 = arith.mulf %117, %119 : vector<8x128xf32>
    %c0_92 = arith.constant 0 : index
    %c0_93 = arith.constant 0 : index
    %121 = vector.load %arg9[%c0_92, %c0_93] : memref<8x256xf32, #tpu.memory_space<vmem>>, vector<8x128xf32>
    tpu.vector_store %arg9[%c0_92, %c0_93], %120 {strides = array<i32>} : memref<8x256xf32, #tpu.memory_space<vmem>>, vector<8x128xf32>,
    %c0_94 = arith.constant 0 : index
    %c128_95 = arith.constant 128 : index
    %122 = vector.load %arg8[%c0_94, %c128_95] : memref<1x256xf32, #tpu.memory_space<vmem>>, vector<1x128xf32>
    %123 = vector.broadcast %122 : vector<1x128xf32> to vector<8x128xf32>
    %124 = arith.mulf %88, %123 : vector<8x128xf32>
    %c0_96 = arith.constant 0 : index
    %c128_97 = arith.constant 128 : index
    %125 = vector.load %arg9[%c0_96, %c128_97] : memref<8x256xf32, #tpu.memory_space<vmem>>, vector<8x128xf32>
    tpu.vector_store %arg9[%c0_96, %c128_97], %124 {strides = array<i32>} : memref<8x256xf32, #tpu.memory_space<vmem>>, vector<8x128xf32>,
    return
  }
  func.func @transform_0(%arg0: i32) -> (i32, i32) {
    %c0_i32 = arith.constant 0 : i32
    %c0_i32_0 = arith.constant 0 : i32
    return %arg0, %c0_i32 : i32, i32
  }
  func.func @transform_1(%arg0: i32) -> (i32, i32, i32) {
    %c0_i32 = arith.constant 0 : i32
    %c0_i32_0 = arith.constant 0 : i32
    %c0_i32_1 = arith.constant 0 : i32
    %c0_i32_2 = arith.constant 0 : i32
    return %c0_i32, %c0_i32_0, %c0_i32_1 : i32, i32, i32
  }
  func.func @transform_2(%arg0: i32) -> (i32, i32, i32) {
    %c0_i32 = arith.constant 0 : i32
    %c0_i32_0 = arith.constant 0 : i32
    %c0_i32_1 = arith.constant 0 : i32
    %c0_i32_2 = arith.constant 0 : i32
    return %c0_i32, %c0_i32_0, %c0_i32_1 : i32, i32, i32
  }
  func.func @transform_3(%arg0: i32) -> (i32, i32, i32) {
    %c0_i32 = arith.constant 0 : i32
    %c0_i32_0 = arith.constant 0 : i32
    %c0_i32_1 = arith.constant 0 : i32
    %c0_i32_2 = arith.constant 0 : i32
    return %c0_i32, %c0_i32_0, %c0_i32_1 : i32, i32, i32
  }
  func.func @transform_4(%arg0: i32) -> (i32, i32, i32) {
    %c0_i32 = arith.constant 0 : i32
    %c0_i32_0 = arith.constant 0 : i32
    %c0_i32_1 = arith.constant 0 : i32
    %c0_i32_2 = arith.constant 0 : i32
    return %c0_i32, %c0_i32_0, %c0_i32_1 : i32, i32, i32
  }
  func.func @transform_5(%arg0: i32) -> (i32, i32, i32) {
    %c0_i32 = arith.constant 0 : i32
    %c0_i32_0 = arith.constant 0 : i32
    %c0_i32_1 = arith.constant 0 : i32
    %c0_i32_2 = arith.constant 0 : i32
    return %c0_i32, %c0_i32_0, %c0_i32_1 : i32, i32, i32
  }
  func.func @transform_6(%arg0: i32) -> (i32, i32, i32) {
    %c0_i32 = arith.constant 0 : i32
    %c0_i32_0 = arith.constant 0 : i32
    %c0_i32_1 = arith.constant 0 : i32
    %c0_i32_2 = arith.constant 0 : i32
    return %c0_i32, %c0_i32_0, %c0_i32_1 : i32, i32, i32
  }
  func.func @transform_7(%arg0: i32) -> (i32, i32) {
    %c0_i32 = arith.constant 0 : i32
    %c0_i32_0 = arith.constant 0 : i32
    %c0_i32_1 = arith.constant 0 : i32
    return %c0_i32, %c0_i32_0 : i32, i32
  }
  func.func @transform_8(%arg0: i32) -> (i32, i32) {
    %c0_i32 = arith.constant 0 : i32
    %c0_i32_0 = arith.constant 0 : i32
    return %arg0, %c0_i32 : i32, i32
  }
}

</mosaic_0001>

<llo_original>
// kernel: tpu_custom_call.1
$region0: #{tpu_custom_call.1}
  #allocation0 [shape = 'u32[]', space=smem, size = 0x4, offset = 0x4, fixed_abs, tag = 'smem constant byte address 0x4 - core index']
  #allocation1 [shape = 'u32[72,128]{1,0:T(1,128)}', space=vmem, size = 0x9000, scoped, tag = 'internal scratch']
  %s0 = inlined_call_operand.hbm [shape: f32[8,256], index: 0, kind: input, shape index: {}]
  %s1 = inlined_call_operand.hbm [shape: bf16[4,128,128], index: 1, kind: input, shape index: {}]
  %s2 = inlined_call_operand.hbm [shape: f32[4,1,128], index: 2, kind: input, shape index: {}]
  %s3 = inlined_call_operand.hbm [shape: bf16[4,128,128], index: 3, kind: input, shape index: {}]
  %s4 = inlined_call_operand.hbm [shape: f32[4,1,128], index: 4, kind: input, shape index: {}]
  %s5 = inlined_call_operand.hbm [shape: bf16[4,128,128], index: 5, kind: input, shape index: {}]
  %s6 = inlined_call_operand.vmem [shape: f32[4,1,128], index: 6, kind: input, shape index: {}]
  %s7 = inlined_call_operand.vmem [shape: f32[1,256], index: 7, kind: input, shape index: {}]
  %s8 = inlined_call_operand.hbm [shape: f32[8,256], index: 8, kind: output, shape index: {}]
  %s9 = sld [smem:[#allocation0]]
  $region66: #{tpu_custom_call.1} parent=0
    _
  %s11 = ssub.s32 1, %s9
  %s12 = scalar_select 0, %s11, %s9
  $region1: #{tpu_custom_call.1} parent=0
    #allocation2 [shape = 'u8[8192]{0}', space=vmem, size = 0x2000, scoped, tag = 'input window, operand 0, single buffered']
    #allocation3 [shape = 's32[1]{0}', space=sflag, size = 0x4, scoped, tag = 'scoped memory for tpu_custom_call.1']
    #allocation4 [shape = 's32[1]{0}', space=sflag, size = 0x4, scoped, tag = 'scoped memory for tpu_custom_call.1']
    #allocation5 [shape = 'u8[131072]{0}', space=vmem, size = 0x20000, scoped, tag = 'input window, operand 1, single buffered']
    #allocation6 [shape = 's32[1]{0}', space=sflag, size = 0x4, scoped, tag = 'scoped memory for tpu_custom_call.1']
    #allocation7 [shape = 'u8[2048]{0}', space=vmem, size = 0x800, scoped, tag = 'input window, operand 2, single buffered']
    #allocation8 [shape = 'u8[131072]{0}', space=vmem, size = 0x20000, scoped, tag = 'input window, operand 3, single buffered']
    #allocation9 [shape = 's32[1]{0}', space=sflag, size = 0x4, scoped, tag = 'scoped memory for tpu_custom_call.1']
    #allocation10 [shape = 'u8[2048]{0}', space=vmem, size = 0x800, scoped, tag = 'input window, operand 4, single buffered']
    #allocation11 [shape = 'u8[131072]{0}', space=vmem, size = 0x20000, scoped, tag = 'input window, operand 5, single buffered']
    #allocation12 [shape = 's32[1]{0}', space=sflag, size = 0x4, scoped, tag = 'scoped memory for tpu_custom_call.1']
    #allocation13 [shape = 'u8[8192]{0}', space=vmem, size = 0x2000, scoped, tag = 'output window, operand 0, single buffered']
    %13 = vsyncpa [#allocation3], 0
    %14 = vsyncpa [#allocation6], 0
    %15 = vsyncpa [#allocation9], 0
    %16 = vsyncpa [#allocation12], 0
    %17 = vsyncpa [#allocation4], 0
    // Predicated region
    $region2: #{tpu_custom_call.1} parent=1 // pred_check
      _
    $region3: #{tpu_custom_call.1} parent=1 // pred_check_branch
      %19 = sbr.rel (0) target = $region5
    $region4: #{tpu_custom_call.1} parent=1 // pred_region
      %21 = vsyncadd [#allocation3], 0
      %s23 = sshll.u32 %s0, 4
      %s24 = int_to_ptr.hbm [resolvable:$true] %s23
      %s25 = sshll.u32 [#allocation2], 4
      %s26 = int_to_ptr.vmem [resolvable:$true] %s25
      %28 = dma.hbm_to_vmem [thread:$0]  %s24, 256, %s26, [#allocation3]
    $region5: #{tpu_custom_call.1} parent=1 // pred_fallthru
      _
    // Predicated region
    $region6: #{tpu_custom_call.1} parent=1 // pred_check
      _
    $region7: #{tpu_custom_call.1} parent=1 // pred_check_branch
      %30 = sbr.rel (0) target = $region9
    $region8: #{tpu_custom_call.1} parent=1 // pred_region
      %32 = vsyncadd [#allocation6], 0
      %s33 = sshll.u32 %s1, 4
      %s34 = int_to_ptr.hbm [resolvable:$true] %s33
      %s35 = sshll.u32 [#allocation5], 4
      %s36 = int_to_ptr.vmem [resolvable:$true] %s35
      %41 = dma.hbm_to_vmem [thread:$0]  %s34, 4096, %s36, [#allocation6], 64, 64, 4
    $region9: #{tpu_custom_call.1} parent=1 // pred_fallthru
      _
    // Predicated region
    $region10: #{tpu_custom_call.1} parent=1 // pred_check
      _
    $region11: #{tpu_custom_call.1} parent=1 // pred_check_branch
      %43 = sbr.rel (0) target = $region13
    $region12: #{tpu_custom_call.1} parent=1 // pred_region
      %45 = vsyncadd [#allocation6], 0
      %s46 = sshll.u32 %s2, 4
      %s47 = int_to_ptr.hbm [resolvable:$true] %s46
      %s48 = sshll.u32 [#allocation7], 4
      %s49 = int_to_ptr.vmem [resolvable:$true] %s48
      %54 = dma.hbm_to_vmem [thread:$0]  %s47, 64, %s49, [#allocation6], 16, 16, 1
    $region13: #{tpu_custom_call.1} parent=1 // pred_fallthru
      _
    // Predicated region
    $region14: #{tpu_custom_call.1} parent=1 // pred_check
      _
    $region15: #{tpu_custom_call.1} parent=1 // pred_check_branch
      %56 = sbr.rel (0) target = $region17
    $region16: #{tpu_custom_call.1} parent=1 // pred_region
      %58 = vsyncadd [#allocation9], 0
      %s59 = sshll.u32 %s3, 4
      %s60 = int_to_ptr.hbm [resolvable:$true] %s59
      %s61 = sshll.u32 [#allocation8], 4
      %s62 = int_to_ptr.vmem [resolvable:$true] %s61
      %67 = dma.hbm_to_vmem [thread:$0]  %s60, 4096, %s62, [#allocation9], 64, 64, 4
    $region17: #{tpu_custom_call.1} parent=1 // pred_fallthru
      _
    // Predicated region
    $region18: #{tpu_custom_call.1} parent=1 // pred_check
      _
    $region19: #{tpu_custom_call.1} parent=1 // pred_check_branch
      %69 = sbr.rel (0) target = $region21
    $region20: #{tpu_custom_call.1} parent=1 // pred_region
      %71 = vsyncadd [#allocation9], 0
      %s72 = sshll.u32 %s4, 4
      %s73 = int_to_ptr.hbm [resolvable:$true] %s72
      %s74 = sshll.u32 [#allocation10], 4
      %s75 = int_to_ptr.vmem [resolvable:$true] %s74
      %80 = dma.hbm_to_vmem [thread:$0]  %s73, 64, %s75, [#allocation9], 16, 16, 1
    $region21: #{tpu_custom_call.1} parent=1 // pred_fallthru
      _
    // Predicated region
    $region22: #{tpu_custom_call.1} parent=1 // pred_check
      _
    $region23: #{tpu_custom_call.1} parent=1 // pred_check_branch
      %82 = sbr.rel (0) target = $region25
    $region24: #{tpu_custom_call.1} parent=1 // pred_region
      %84 = vsyncadd [#allocation12], 0
      %s85 = sshll.u32 %s5, 4
      %s86 = int_to_ptr.hbm [resolvable:$true] %s85
      %s87 = sshll.u32 [#allocation11], 4
      %s88 = int_to_ptr.vmem [resolvable:$true] %s87
      %93 = dma.hbm_to_vmem [thread:$0]  %s86, 4096, %s88, [#allocation12], 64, 64, 4
    $region25: #{tpu_custom_call.1} parent=1 // pred_fallthru
      _
    // Predicated region
    $region26: #{tpu_custom_call.1} parent=1 // pred_check
      _
    $region27: #{tpu_custom_call.1} parent=1 // pred_check_branch
      %95 = sbr.rel (0) target = $region29
    $region28: #{tpu_custom_call.1} parent=1 // pred_region
      _
    $region29: #{tpu_custom_call.1} parent=1 // pred_fallthru
      _
    // Predicated region
    $region30: #{tpu_custom_call.1} parent=1 // pred_check
      _
    $region31: #{tpu_custom_call.1} parent=1 // pred_check_branch
      %97 = sbr.rel (0) target = $region33
    $region32: #{tpu_custom_call.1} parent=1 // pred_region
      _
    $region33: #{tpu_custom_call.1} parent=1 // pred_fallthru
      _
    // Predicated region
    $region34: #{tpu_custom_call.1} parent=1 // pred_check
      _
    $region35: #{tpu_custom_call.1} parent=1 // pred_check_branch
      %99 = sbr.rel (0) target = $region37
    $region36: #{tpu_custom_call.1} parent=1 // pred_region
      %101 = dma.done [#allocation3], 256
    $region37: #{tpu_custom_call.1} parent=1 // pred_fallthru
      _
    // Predicated region
    $region38: #{tpu_custom_call.1} parent=1 // pred_check
      _
    $region39: #{tpu_custom_call.1} parent=1 // pred_check_branch
      %103 = sbr.rel (0) target = $region41
    $region40: #{tpu_custom_call.1} parent=1 // pred_region
      %105 = dma.done [#allocation6], 4096
    $region41: #{tpu_custom_call.1} parent=1 // pred_fallthru
      _
    // Predicated region
    $region42: #{tpu_custom_call.1} parent=1 // pred_check
      _
    $region43: #{tpu_custom_call.1} parent=1 // pred_check_branch
      %107 = sbr.rel (0) target = $region45
    $region44: #{tpu_custom_call.1} parent=1 // pred_region
      %109 = dma.done [#allocation6], 64
    $region45: #{tpu_custom_call.1} parent=1 // pred_fallthru
      _
    // Predicated region
    $region46: #{tpu_custom_call.1} parent=1 // pred_check
      _
    $region47: #{tpu_custom_call.1} parent=1 // pred_check_branch
      %111 = sbr.rel (0) target = $region49
    $region48: #{tpu_custom_call.1} parent=1 // pred_region
      %113 = dma.done [#allocation9], 4096
    $region49: #{tpu_custom_call.1} parent=1 // pred_fallthru
      _
    // Predicated region
    $region50: #{tpu_custom_call.1} parent=1 // pred_check
      _
    $region51: #{tpu_custom_call.1} parent=1 // pred_check_branch
      %115 = sbr.rel (0) target = $region53
    $region52: #{tpu_custom_call.1} parent=1 // pred_region
      %117 = dma.done [#allocation9], 64
    $region53: #{tpu_custom_call.1} parent=1 // pred_fallthru
      _
    // Predicated region
    $region54: #{tpu_custom_call.1} parent=1 // pred_check
      _
    $region55: #{tpu_custom_call.1} parent=1 // pred_check_branch
      %119 = sbr.rel (0) target = $region57
    $region56: #{tpu_custom_call.1} parent=1 // pred_region
      %121 = dma.done [#allocation12], 4096
    $region57: #{tpu_custom_call.1} parent=1 // pred_fallthru
      _
    %v122 = vld [vmem:[#allocation2] sm:$0xff]
    %v123 = vld [vmem:[#allocation2 + $0x8] sm:$0xff]
    %v124 = vpack.c.bf16 %v122, %v122
    %v125 = vld [vmem:[#allocation5] sm:$0xf]
    %v126 = vld [vmem:[#allocation5 + $0x4] sm:$0xf]
    %v127 = vld [vmem:[#allocation5 + $0x8] sm:$0xf]
    %v128 = vld [vmem:[#allocation5 + $0xc] sm:$0xf]
    %v129 = vld [vmem:[#allocation5 + $0x10] sm:$0xf]
    %v130 = vld [vmem:[#allocation5 + $0x14] sm:$0xf]
    %v131 = vld [vmem:[#allocation5 + $0x18] sm:$0xf]
    %v132 = vld [vmem:[#allocation5 + $0x1c] sm:$0xf]
    %v133 = vld [vmem:[#allocation5 + $0x20] sm:$0xf]
    %v134 = vld [vmem:[#allocation5 + $0x24] sm:$0xf]
    %v135 = vld [vmem:[#allocation5 + $0x28] sm:$0xf]
    %v136 = vld [vmem:[#allocation5 + $0x2c] sm:$0xf]
    %v137 = vld [vmem:[#allocation5 + $0x30] sm:$0xf]
    %v138 = vld [vmem:[#allocation5 + $0x34] sm:$0xf]
    %v139 = vld [vmem:[#allocation5 + $0x38] sm:$0xf]
    %v140 = vld [vmem:[#allocation5 + $0x3c] sm:$0xf]
    %v141 = vld [vmem:[#allocation7] sm:$0x1]
    %v143 = vperm.slane %v141, 0
    %v161 = vunpack.c.l.b16 %v125
    %v162 = vunpack.c.l.b16 %v126
    %v163 = vunpack.c.l.b16 %v127
    %v164 = vunpack.c.l.b16 %v128
    %v165 = vunpack.c.l.b16 %v129
    %v166 = vunpack.c.l.b16 %v130
    %v167 = vunpack.c.l.b16 %v131
    %v168 = vunpack.c.l.b16 %v132
    %v169 = vunpack.c.l.b16 %v133
    %v170 = vunpack.c.l.b16 %v134
    %v171 = vunpack.c.l.b16 %v135
    %v172 = vunpack.c.l.b16 %v136
    %v173 = vunpack.c.l.b16 %v137
    %v174 = vunpack.c.l.b16 %v138
    %v175 = vunpack.c.l.b16 %v139
    %v176 = vunpack.c.l.b16 %v140
    %v177 = vpack.c.b16 %v162, %v161
    %v178 = vpack.c.b16 %v164, %v163
    %v179 = vpack.c.b16 %v166, %v165
    %v180 = vpack.c.b16 %v168, %v167
    %v181 = vpack.c.b16 %v170, %v169
    %v182 = vpack.c.b16 %v172, %v171
    %v183 = vpack.c.b16 %v174, %v173
    %v184 = vpack.c.b16 %v176, %v175
    %193 = vmatpush.bf16.msra.mxu0 %v184
    %194 = vmatpush.bf16.msra.mxu0 %v183
    %195 = vmatpush.bf16.msra.mxu0 %v182
    %196 = vmatpush.bf16.msra.mxu0 %v181
    %197 = vmatpush.bf16.msra.mxu0 %v180
    %198 = vmatpush.bf16.msra.mxu0 %v179
    %199 = vmatpush.bf16.msra.mxu0 %v178
    %200 = vmatpush.bf16.msra.mxu0 %v177
    %201 = vmatmul.bf16.gmra.mxu0 %v124
    %v202 = vpop.f32.mrf.mxu0
    %v203 = vadd.f32 %v143, %v202
    %v204 = vpop.f32.mrf.mxu0
    %205 = vdwg.mxu0
    %v206 = vmax.f32 %v203, 0.0
    %v207 = vpack.c.bf16 %v206, %v206
    %v208 = vld [vmem:[#allocation8] sm:$0xf]
    %v209 = vld [vmem:[#allocation8 + $0x4] sm:$0xf]
    %v210 = vld [vmem:[#allocation8 + $0x8] sm:$0xf]
    %v211 = vld [vmem:[#allocation8 + $0xc] sm:$0xf]
    %v212 = vld [vmem:[#allocation8 + $0x10] sm:$0xf]
    %v213 = vld [vmem:[#allocation8 + $0x14] sm:$0xf]
    %v214 = vld [vmem:[#allocation8 + $0x18] sm:$0xf]
    %v215 = vld [vmem:[#allocation8 + $0x1c] sm:$0xf]
    %v216 = vld [vmem:[#allocation8 + $0x20] sm:$0xf]
    %v217 = vld [vmem:[#allocation8 + $0x24] sm:$0xf]
    %v218 = vld [vmem:[#allocation8 + $0x28] sm:$0xf]
    %v219 = vld [vmem:[#allocation8 + $0x2c] sm:$0xf]
    %v220 = vld [vmem:[#allocation8 + $0x30] sm:$0xf]
    %v221 = vld [vmem:[#allocation8 + $0x34] sm:$0xf]
    %v222 = vld [vmem:[#allocation8 + $0x38] sm:$0xf]
    %v223 = vld [vmem:[#allocation8 + $0x3c] sm:$0xf]
    %v224 = vld [vmem:[#allocation10] sm:$0x1]
    %v226 = vperm.slane %v224, 0
    %v244 = vunpack.c.l.b16 %v208
    %v245 = vunpack.c.l.b16 %v209
    %v246 = vunpack.c.l.b16 %v210
    %v247 = vunpack.c.l.b16 %v211
    %v248 = vunpack.c.l.b16 %v212
    %v249 = vunpack.c.l.b16 %v213
    %v250 = vunpack.c.l.b16 %v214
    %v251 = vunpack.c.l.b16 %v215
    %v252 = vunpack.c.l.b16 %v216
    %v253 = vunpack.c.l.b16 %v217
    %v254 = vunpack.c.l.b16 %v218
    %v255 = vunpack.c.l.b16 %v219
    %v256 = vunpack.c.l.b16 %v220
    %v257 = vunpack.c.l.b16 %v221
    %v258 = vunpack.c.l.b16 %v222
    %v259 = vunpack.c.l.b16 %v223
    %v260 = vpack.c.b16 %v245, %v244
    %v261 = vpack.c.b16 %v247, %v246
    %v262 = vpack.c.b16 %v249, %v248
    %v263 = vpack.c.b16 %v251, %v250
    %v264 = vpack.c.b16 %v253, %v252
    %v265 = vpack.c.b16 %v255, %v254
    %v266 = vpack.c.b16 %v257, %v256
    %v267 = vpack.c.b16 %v259, %v258
    %276 = vmatpush.bf16.msra.mxu0 %v267
    %277 = vmatpush.bf16.msra.mxu0 %v266
    %278 = vmatpush.bf16.msra.mxu0 %v265
    %279 = vmatpush.bf16.msra.mxu0 %v264
    %280 = vmatpush.bf16.msra.mxu0 %v263
    %281 = vmatpush.bf16.msra.mxu0 %v262
    %282 = vmatpush.bf16.msra.mxu0 %v261
    %283 = vmatpush.bf16.msra.mxu0 %v260
    %284 = vmatmul.bf16.gmra.mxu0 %v207
    %v285 = vpop.f32.mrf.mxu0
    %v286 = vadd.f32 %v226, %v285
    %v287 = vpop.f32.mrf.mxu0
    %288 = vdwg.mxu0
    %v289 = vmax.f32 %v286, 0.0
    %v290 = vpack.c.bf16 %v289, %v289
    %v291 = vld [vmem:[#allocation11] sm:$0xf]
    %v292 = vld [vmem:[#allocation11 + $0x4] sm:$0xf]
    %v293 = vld [vmem:[#allocation11 + $0x8] sm:$0xf]
    %v294 = vld [vmem:[#allocation11 + $0xc] sm:$0xf]
    %v295 = vld [vmem:[#allocation11 + $0x10] sm:$0xf]
    %v296 = vld [vmem:[#allocation11 + $0x14] sm:$0xf]
    %v297 = vld [vmem:[#allocation11 + $0x18] sm:$0xf]
    %v298 = vld [vmem:[#allocation11 + $0x1c] sm:$0xf]
    %v299 = vld [vmem:[#allocation11 + $0x20] sm:$0xf]
    %v300 = vld [vmem:[#allocation11 + $0x24] sm:$0xf]
    %v301 = vld [vmem:[#allocation11 + $0x28] sm:$0xf]
    %v302 = vld [vmem:[#allocation11 + $0x2c] sm:$0xf]
    %v303 = vld [vmem:[#allocation11 + $0x30] sm:$0xf]
    %v304 = vld [vmem:[#allocation11 + $0x34] sm:$0xf]
    %v305 = vld [vmem:[#allocation11 + $0x38] sm:$0xf]
    %v306 = vld [vmem:[#allocation11 + $0x3c] sm:$0xf]
    %v307 = vld [vmem:[%s6] sm:$0x1]
    %v309 = vperm.slane %v307, 0
    %v327 = vunpack.c.l.b16 %v291
    %v328 = vunpack.c.l.b16 %v292
    %v329 = vunpack.c.l.b16 %v293
    %v330 = vunpack.c.l.b16 %v294
    %v331 = vunpack.c.l.b16 %v295
    %v332 = vunpack.c.l.b16 %v296
    %v333 = vunpack.c.l.b16 %v297
    %v334 = vunpack.c.l.b16 %v298
    %v335 = vunpack.c.l.b16 %v299
    %v336 = vunpack.c.l.b16 %v300
    %v337 = vunpack.c.l.b16 %v301
    %v338 = vunpack.c.l.b16 %v302
    %v339 = vunpack.c.l.b16 %v303
    %v340 = vunpack.c.l.b16 %v304
    %v341 = vunpack.c.l.b16 %v305
    %v342 = vunpack.c.l.b16 %v306
    %v343 = vpack.c.b16 %v328, %v327
    %v344 = vpack.c.b16 %v330, %v329
    %v345 = vpack.c.b16 %v332, %v331
    %v346 = vpack.c.b16 %v334, %v333
    %v347 = vpack.c.b16 %v336, %v335
    %v348 = vpack.c.b16 %v338, %v337
    %v349 = vpack.c.b16 %v340, %v339
    %v350 = vpack.c.b16 %v342, %v341
    %359 = vmatpush.bf16.msra.mxu0 %v350
    %360 = vmatpush.bf16.msra.mxu0 %v349
    %361 = vmatpush.bf16.msra.mxu0 %v348
    %362 = vmatpush.bf16.msra.mxu0 %v347
    %363 = vmatpush.bf16.msra.mxu0 %v346
    %364 = vmatpush.bf16.msra.mxu0 %v345
    %365 = vmatpush.bf16.msra.mxu0 %v344
    %366 = vmatpush.bf16.msra.mxu0 %v343
    %367 = vmatmul.bf16.gmra.mxu0 %v290
    %v368 = vpop.f32.mrf.mxu0
    %v369 = vadd.f32 %v309, %v368
    %v370 = vpop.f32.mrf.mxu0
    %371 = vdwg.mxu0
    %v372 = vadd.f32 %v123, %v369
    %v373 = vpack.c.bf16 %v372, %v372
    %s374 = scalar_lea.vmem [#allocation5], 64
    %v375 = vld [vmem:[%s374] sm:$0xf]
    %v376 = vld [vmem:[%s374 + $0x4] sm:$0xf]
    %v377 = vld [vmem:[%s374 + $0x8] sm:$0xf]
    %v378 = vld [vmem:[%s374 + $0xc] sm:$0xf]
    %v379 = vld [vmem:[%s374 + $0x10] sm:$0xf]
    %v380 = vld [vmem:[%s374 + $0x14] sm:$0xf]
    %v381 = vld [vmem:[%s374 + $0x18] sm:$0xf]
    %v382 = vld [vmem:[%s374 + $0x1c] sm:$0xf]
    %v383 = vld [vmem:[%s374 + $0x20] sm:$0xf]
    %v384 = vld [vmem:[%s374 + $0x24] sm:$0xf]
    %v385 = vld [vmem:[%s374 + $0x28] sm:$0xf]
    %v386 = vld [vmem:[%s374 + $0x2c] sm:$0xf]
    %v387 = vld [vmem:[%s374 + $0x30] sm:$0xf]
    %v388 = vld [vmem:[%s374 + $0x34] sm:$0xf]
    %v389 = vld [vmem:[%s374 + $0x38] sm:$0xf]
    %v390 = vld [vmem:[%s374 + $0x3c] sm:$0xf]
    %s391 = scalar_lea.vmem [#allocation7], 1
    %v392 = vld [vmem:[%s391] sm:$0x1]
    %v394 = vperm.slane %v392, 0
    %v412 = vunpack.c.l.b16 %v375
    %v413 = vunpack.c.l.b16 %v376
    %v414 = vunpack.c.l.b16 %v377
    %v415 = vunpack.c.l.b16 %v378
    %v416 = vunpack.c.l.b16 %v379
    %v417 = vunpack.c.l.b16 %v380
    %v418 = vunpack.c.l.b16 %v381
    %v419 = vunpack.c.l.b16 %v382
    %v420 = vunpack.c.l.b16 %v383
    %v421 = vunpack.c.l.b16 %v384
    %v422 = vunpack.c.l.b16 %v385
    %v423 = vunpack.c.l.b16 %v386
    %v424 = vunpack.c.l.b16 %v387
    %v425 = vunpack.c.l.b16 %v388
    %v426 = vunpack.c.l.b16 %v389
    %v427 = vunpack.c.l.b16 %v390
    %v428 = vpack.c.b16 %v413, %v412
    %v429 = vpack.c.b16 %v415, %v414
    %v430 = vpack.c.b16 %v417, %v416
    %v431 = vpack.c.b16 %v419, %v418
    %v432 = vpack.c.b16 %v421, %v420
    %v433 = vpack.c.b16 %v423, %v422
    %v434 = vpack.c.b16 %v425, %v424
    %v435 = vpack.c.b16 %v427, %v426
    %444 = vmatpush.bf16.msra.mxu0 %v435
    %445 = vmatpush.bf16.msra.mxu0 %v434
    %446 = vmatpush.bf16.msra.mxu0 %v433
    %447 = vmatpush.bf16.msra.mxu0 %v432
    %448 = vmatpush.bf16.msra.mxu0 %v431
    %449 = vmatpush.bf16.msra.mxu0 %v430
    %450 = vmatpush.bf16.msra.mxu0 %v429
    %451 = vmatpush.bf16.msra.mxu0 %v428
    %452 = vmatmul.bf16.gmra.mxu0 %v373
    %v453 = vpop.f32.mrf.mxu0
    %v454 = vadd.f32 %v394, %v453
    %v455 = vpop.f32.mrf.mxu0
    %456 = vdwg.mxu0
    %v457 = vmax.f32 %v454, 0.0
    %v458 = vpack.c.bf16 %v457, %v457
    %s459 = scalar_lea.vmem [#allocation8], 64
    %v460 = vld [vmem:[%s459] sm:$0xf]
    %v461 = vld [vmem:[%s459 + $0x4] sm:$0xf]
    %v462 = vld [vmem:[%s459 + $0x8] sm:$0xf]
    %v463 = vld [vmem:[%s459 + $0xc] sm:$0xf]
    %v464 = vld [vmem:[%s459 + $0x10] sm:$0xf]
    %v465 = vld [vmem:[%s459 + $0x14] sm:$0xf]
    %v466 = vld [vmem:[%s459 + $0x18] sm:$0xf]
    %v467 = vld [vmem:[%s459 + $0x1c] sm:$0xf]
    %v468 = vld [vmem:[%s459 + $0x20] sm:$0xf]
    %v469 = vld [vmem:[%s459 + $0x24] sm:$0xf]
    %v470 = vld [vmem:[%s459 + $0x28] sm:$0xf]
    %v471 = vld [vmem:[%s459 + $0x2c] sm:$0xf]
    %v472 = vld [vmem:[%s459 + $0x30] sm:$0xf]
    %v473 = vld [vmem:[%s459 + $0x34] sm:$0xf]
    %v474 = vld [vmem:[%s459 + $0x38] sm:$0xf]
    %v475 = vld [vmem:[%s459 + $0x3c] sm:$0xf]
    %s476 = scalar_lea.vmem [#allocation10], 1
    %v477 = vld [vmem:[%s476] sm:$0x1]
    %v479 = vperm.slane %v477, 0
    %v497 = vunpack.c.l.b16 %v460
    %v498 = vunpack.c.l.b16 %v461
    %v499 = vunpack.c.l.b16 %v462
    %v500 = vunpack.c.l.b16 %v463
    %v501 = vunpack.c.l.b16 %v464
    %v502 = vunpack.c.l.b16 %v465
    %v503 = vunpack.c.l.b16 %v466
    %v504 = vunpack.c.l.b16 %v467
    %v505 = vunpack.c.l.b16 %v468
    %v506 = vunpack.c.l.b16 %v469
    %v507 = vunpack.c.l.b16 %v470
    %v508 = vunpack.c.l.b16 %v471
    %v509 = vunpack.c.l.b16 %v472
    %v510 = vunpack.c.l.b16 %v473
    %v511 = vunpack.c.l.b16 %v474
    %v512 = vunpack.c.l.b16 %v475
    %v513 = vpack.c.b16 %v498, %v497
    %v514 = vpack.c.b16 %v500, %v499
    %v515 = vpack.c.b16 %v502, %v501
    %v516 = vpack.c.b16 %v504, %v503
    %v517 = vpack.c.b16 %v506, %v505
    %v518 = vpack.c.b16 %v508, %v507
    %v519 = vpack.c.b16 %v510, %v509
    %v520 = vpack.c.b16 %v512, %v511
    %529 = vmatpush.bf16.msra.mxu0 %v520
    %530 = vmatpush.bf16.msra.mxu0 %v519
    %531 = vmatpush.bf16.msra.mxu0 %v518
    %532 = vmatpush.bf16.msra.mxu0 %v517
    %533 = vmatpush.bf16.msra.mxu0 %v516
    %534 = vmatpush.bf16.msra.mxu0 %v515
    %535 = vmatpush.bf16.msra.mxu0 %v514
    %536 = vmatpush.bf16.msra.mxu0 %v513
    %537 = vmatmul.bf16.gmra.mxu0 %v458
    %v538 = vpop.f32.mrf.mxu0
    %v539 = vadd.f32 %v479, %v538
    %v540 = vpop.f32.mrf.mxu0
    %541 = vdwg.mxu0
    %v542 = vmax.f32 %v539, 0.0
    %v543 = vpack.c.bf16 %v542, %v542
    %s544 = scalar_lea.vmem [#allocation11], 64
    %v545 = vld [vmem:[%s544] sm:$0xf]
    %v546 = vld [vmem:[%s544 + $0x4] sm:$0xf]
    %v547 = vld [vmem:[%s544 + $0x8] sm:$0xf]
    %v548 = vld [vmem:[%s544 + $0xc] sm:$0xf]
    %v549 = vld [vmem:[%s544 + $0x10] sm:$0xf]
    %v550 = vld [vmem:[%s544 + $0x14] sm:$0xf]
    %v551 = vld [vmem:[%s544 + $0x18] sm:$0xf]
    %v552 = vld [vmem:[%s544 + $0x1c] sm:$0xf]
    %v553 = vld [vmem:[%s544 + $0x20] sm:$0xf]
    %v554 = vld [vmem:[%s544 + $0x24] sm:$0xf]
    %v555 = vld [vmem:[%s544 + $0x28] sm:$0xf]
    %v556 = vld [vmem:[%s544 + $0x2c] sm:$0xf]
    %v557 = vld [vmem:[%s544 + $0x30] sm:$0xf]
    %v558 = vld [vmem:[%s544 + $0x34] sm:$0xf]
    %v559 = vld [vmem:[%s544 + $0x38] sm:$0xf]
    %v560 = vld [vmem:[%s544 + $0x3c] sm:$0xf]
    %s561 = scalar_lea.vmem %s6, 1
    %v562 = vld [vmem:[%s561] sm:$0x1]
    %v564 = vperm.slane %v562, 0
    %v582 = vunpack.c.l.b16 %v545
    %v583 = vunpack.c.l.b16 %v546
    %v584 = vunpack.c.l.b16 %v547
    %v585 = vunpack.c.l.b16 %v548
    %v586 = vunpack.c.l.b16 %v549
    %v587 = vunpack.c.l.b16 %v550
    %v588 = vunpack.c.l.b16 %v551
    %v589 = vunpack.c.l.b16 %v552
    %v590 = vunpack.c.l.b16 %v553
    %v591 = vunpack.c.l.b16 %v554
    %v592 = vunpack.c.l.b16 %v555
    %v593 = vunpack.c.l.b16 %v556
    %v594 = vunpack.c.l.b16 %v557
    %v595 = vunpack.c.l.b16 %v558
    %v596 = vunpack.c.l.b16 %v559
    %v597 = vunpack.c.l.b16 %v560
    %v598 = vpack.c.b16 %v583, %v582
    %v599 = vpack.c.b16 %v585, %v584
    %v600 = vpack.c.b16 %v587, %v586
    %v601 = vpack.c.b16 %v589, %v588
    %v602 = vpack.c.b16 %v591, %v590
    %v603 = vpack.c.b16 %v593, %v592
    %v604 = vpack.c.b16 %v595, %v594
    %v605 = vpack.c.b16 %v597, %v596
    %614 = vmatpush.bf16.msra.mxu0 %v605
    %615 = vmatpush.bf16.msra.mxu0 %v604
    %616 = vmatpush.bf16.msra.mxu0 %v603
    %617 = vmatpush.bf16.msra.mxu0 %v602
    %618 = vmatpush.bf16.msra.mxu0 %v601
    %619 = vmatpush.bf16.msra.mxu0 %v600
    %620 = vmatpush.bf16.msra.mxu0 %v599
    %621 = vmatpush.bf16.msra.mxu0 %v598
    %622 = vmatmul.bf16.gmra.mxu0 %v543
    %v623 = vpop.f32.mrf.mxu0
    %v624 = vadd.f32 %v564, %v623
    %v625 = vpop.f32.mrf.mxu0
    %626 = vdwg.mxu0
    %v627 = vadd.f32 %v122, %v624
    %v628 = vpack.c.bf16 %v627, %v627
    %s629 = scalar_lea.vmem [#allocation5], 128
    %v630 = vld [vmem:[%s629] sm:$0xf]
    %v631 = vld [vmem:[%s629 + $0x4] sm:$0xf]
    %v632 = vld [vmem:[%s629 + $0x8] sm:$0xf]
    %v633 = vld [vmem:[%s629 + $0xc] sm:$0xf]
    %v634 = vld [vmem:[%s629 + $0x10] sm:$0xf]
    %v635 = vld [vmem:[%s629 + $0x14] sm:$0xf]
    %v636 = vld [vmem:[%s629 + $0x18] sm:$0xf]
    %v637 = vld [vmem:[%s629 + $0x1c] sm:$0xf]
    %v638 = vld [vmem:[%s629 + $0x20] sm:$0xf]
    %v639 = vld [vmem:[%s629 + $0x24] sm:$0xf]
    %v640 = vld [vmem:[%s629 + $0x28] sm:$0xf]
    %v641 = vld [vmem:[%s629 + $0x2c] sm:$0xf]
    %v642 = vld [vmem:[%s629 + $0x30] sm:$0xf]
    %v643 = vld [vmem:[%s629 + $0x34] sm:$0xf]
    %v644 = vld [vmem:[%s629 + $0x38] sm:$0xf]
    %v645 = vld [vmem:[%s629 + $0x3c] sm:$0xf]
    %s646 = scalar_lea.vmem [#allocation7], 2
    %v647 = vld [vmem:[%s646] sm:$0x1]
    %v649 = vperm.slane %v647, 0
    %v667 = vunpack.c.l.b16 %v630
    %v668 = vunpack.c.l.b16 %v631
    %v669 = vunpack.c.l.b16 %v632
    %v670 = vunpack.c.l.b16 %v633
    %v671 = vunpack.c.l.b16 %v634
    %v672 = vunpack.c.l.b16 %v635
    %v673 = vunpack.c.l.b16 %v636
    %v674 = vunpack.c.l.b16 %v637
    %v675 = vunpack.c.l.b16 %v638
    %v676 = vunpack.c.l.b16 %v639
    %v677 = vunpack.c.l.b16 %v640
    %v678 = vunpack.c.l.b16 %v641
    %v679 = vunpack.c.l.b16 %v642
    %v680 = vunpack.c.l.b16 %v643
    %v681 = vunpack.c.l.b16 %v644
    %v682 = vunpack.c.l.b16 %v645
    %v683 = vpack.c.b16 %v668, %v667
    %v684 = vpack.c.b16 %v670, %v669
    %v685 = vpack.c.b16 %v672, %v671
    %v686 = vpack.c.b16 %v674, %v673
    %v687 = vpack.c.b16 %v676, %v675
    %v688 = vpack.c.b16 %v678, %v677
    %v689 = vpack.c.b16 %v680, %v679
    %v690 = vpack.c.b16 %v682, %v681
    %699 = vmatpush.bf16.msra.mxu0 %v690
    %700 = vmatpush.bf16.msra.mxu0 %v689
    %701 = vmatpush.bf16.msra.mxu0 %v688
    %702 = vmatpush.bf16.msra.mxu0 %v687
    %703 = vmatpush.bf16.msra.mxu0 %v686
    %704 = vmatpush.bf16.msra.mxu0 %v685
    %705 = vmatpush.bf16.msra.mxu0 %v684
    %706 = vmatpush.bf16.msra.mxu0 %v683
    %707 = vmatmul.bf16.gmra.mxu0 %v628
    %v708 = vpop.f32.mrf.mxu0
    %v709 = vadd.f32 %v649, %v708
    %v710 = vpop.f32.mrf.mxu0
    %711 = vdwg.mxu0
    %v712 = vmax.f32 %v709, 0.0
    %v713 = vpack.c.bf16 %v712, %v712
    %s714 = scalar_lea.vmem [#allocation8], 128
    %v715 = vld [vmem:[%s714] sm:$0xf]
    %v716 = vld [vmem:[%s714 + $0x4] sm:$0xf]
    %v717 = vld [vmem:[%s714 + $0x8] sm:$0xf]
    %v718 = vld [vmem:[%s714 + $0xc] sm:$0xf]
    %v719 = vld [vmem:[%s714 + $0x10] sm:$0xf]
    %v720 = vld [vmem:[%s714 + $0x14] sm:$0xf]
    %v721 = vld [vmem:[%s714 + $0x18] sm:$0xf]
    %v722 = vld [vmem:[%s714 + $0x1c] sm:$0xf]
    %v723 = vld [vmem:[%s714 + $0x20] sm:$0xf]
    %v724 = vld [vmem:[%s714 + $0x24] sm:$0xf]
    %v725 = vld [vmem:[%s714 + $0x28] sm:$0xf]
    %v726 = vld [vmem:[%s714 + $0x2c] sm:$0xf]
    %v727 = vld [vmem:[%s714 + $0x30] sm:$0xf]
    %v728 = vld [vmem:[%s714 + $0x34] sm:$0xf]
    %v729 = vld [vmem:[%s714 + $0x38] sm:$0xf]
    %v730 = vld [vmem:[%s714 + $0x3c] sm:$0xf]
    %s731 = scalar_lea.vmem [#allocation10], 2
    %v732 = vld [vmem:[%s731] sm:$0x1]
    %v734 = vperm.slane %v732, 0
    %v752 = vunpack.c.l.b16 %v715
    %v753 = vunpack.c.l.b16 %v716
    %v754 = vunpack.c.l.b16 %v717
    %v755 = vunpack.c.l.b16 %v718
    %v756 = vunpack.c.l.b16 %v719
    %v757 = vunpack.c.l.b16 %v720
    %v758 = vunpack.c.l.b16 %v721
    %v759 = vunpack.c.l.b16 %v722
    %v760 = vunpack.c.l.b16 %v723
    %v761 = vunpack.c.l.b16 %v724
    %v762 = vunpack.c.l.b16 %v725
    %v763 = vunpack.c.l.b16 %v726
    %v764 = vunpack.c.l.b16 %v727
    %v765 = vunpack.c.l.b16 %v728
    %v766 = vunpack.c.l.b16 %v729
    %v767 = vunpack.c.l.b16 %v730
    %v768 = vpack.c.b16 %v753, %v752
    %v769 = vpack.c.b16 %v755, %v754
    %v770 = vpack.c.b16 %v757, %v756
    %v771 = vpack.c.b16 %v759, %v758
    %v772 = vpack.c.b16 %v761, %v760
    %v773 = vpack.c.b16 %v763, %v762
    %v774 = vpack.c.b16 %v765, %v764
    %v775 = vpack.c.b16 %v767, %v766
    %784 = vmatpush.bf16.msra.mxu0 %v775
    %785 = vmatpush.bf16.msra.mxu0 %v774
    %786 = vmatpush.bf16.msra.mxu0 %v773
    %787 = vmatpush.bf16.msra.mxu0 %v772
    %788 = vmatpush.bf16.msra.mxu0 %v771
    %789 = vmatpush.bf16.msra.mxu0 %v770
    %790 = vmatpush.bf16.msra.mxu0 %v769
    %791 = vmatpush.bf16.msra.mxu0 %v768
    %792 = vmatmul.bf16.gmra.mxu0 %v713
    %v793 = vpop.f32.mrf.mxu0
    %v794 = vadd.f32 %v734, %v793
    %v795 = vpop.f32.mrf.mxu0
    %796 = vdwg.mxu0
    %v797 = vmax.f32 %v794, 0.0
    %v798 = vpack.c.bf16 %v797, %v797
    %s799 = scalar_lea.vmem [#allocation11], 128
    %v800 = vld [vmem:[%s799] sm:$0xf]
    %v801 = vld [vmem:[%s799 + $0x4] sm:$0xf]
    %v802 = vld [vmem:[%s799 + $0x8] sm:$0xf]
    %v803 = vld [vmem:[%s799 + $0xc] sm:$0xf]
    %v804 = vld [vmem:[%s799 + $0x10] sm:$0xf]
    %v805 = vld [vmem:[%s799 + $0x14] sm:$0xf]
    %v806 = vld [vmem:[%s799 + $0x18] sm:$0xf]
    %v807 = vld [vmem:[%s799 + $0x1c] sm:$0xf]
    %v808 = vld [vmem:[%s799 + $0x20] sm:$0xf]
    %v809 = vld [vmem:[%s799 + $0x24] sm:$0xf]
    %v810 = vld [vmem:[%s799 + $0x28] sm:$0xf]
    %v811 = vld [vmem:[%s799 + $0x2c] sm:$0xf]
    %v812 = vld [vmem:[%s799 + $0x30] sm:$0xf]
    %v813 = vld [vmem:[%s799 + $0x34] sm:$0xf]
    %v814 = vld [vmem:[%s799 + $0x38] sm:$0xf]
    %v815 = vld [vmem:[%s799 + $0x3c] sm:$0xf]
    %s816 = scalar_lea.vmem %s6, 2
    %v817 = vld [vmem:[%s816] sm:$0x1]
    %v819 = vperm.slane %v817, 0
    %v837 = vunpack.c.l.b16 %v800
    %v838 = vunpack.c.l.b16 %v801
    %v839 = vunpack.c.l.b16 %v802
    %v840 = vunpack.c.l.b16 %v803
    %v841 = vunpack.c.l.b16 %v804
    %v842 = vunpack.c.l.b16 %v805
    %v843 = vunpack.c.l.b16 %v806
    %v844 = vunpack.c.l.b16 %v807
    %v845 = vunpack.c.l.b16 %v808
    %v846 = vunpack.c.l.b16 %v809
    %v847 = vunpack.c.l.b16 %v810
    %v848 = vunpack.c.l.b16 %v811
    %v849 = vunpack.c.l.b16 %v812
    %v850 = vunpack.c.l.b16 %v813
    %v851 = vunpack.c.l.b16 %v814
    %v852 = vunpack.c.l.b16 %v815
    %v853 = vpack.c.b16 %v838, %v837
    %v854 = vpack.c.b16 %v840, %v839
    %v855 = vpack.c.b16 %v842, %v841
    %v856 = vpack.c.b16 %v844, %v843
    %v857 = vpack.c.b16 %v846, %v845
    %v858 = vpack.c.b16 %v848, %v847
    %v859 = vpack.c.b16 %v850, %v849
    %v860 = vpack.c.b16 %v852, %v851
    %869 = vmatpush.bf16.msra.mxu0 %v860
    %870 = vmatpush.bf16.msra.mxu0 %v859
    %871 = vmatpush.bf16.msra.mxu0 %v858
    %872 = vmatpush.bf16.msra.mxu0 %v857
    %873 = vmatpush.bf16.msra.mxu0 %v856
    %874 = vmatpush.bf16.msra.mxu0 %v855
    %875 = vmatpush.bf16.msra.mxu0 %v854
    %876 = vmatpush.bf16.msra.mxu0 %v853
    %877 = vmatmul.bf16.gmra.mxu0 %v798
    %v878 = vpop.f32.mrf.mxu0
    %v879 = vadd.f32 %v819, %v878
    %v880 = vpop.f32.mrf.mxu0
    %881 = vdwg.mxu0
    %v882 = vadd.f32 %v372, %v879
    %v883 = vpack.c.bf16 %v882, %v882
    %s884 = scalar_lea.vmem [#allocation5], 192
    %v885 = vld [vmem:[%s884] sm:$0xf]
    %v886 = vld [vmem:[%s884 + $0x4] sm:$0xf]
    %v887 = vld [vmem:[%s884 + $0x8] sm:$0xf]
    %v888 = vld [vmem:[%s884 + $0xc] sm:$0xf]
    %v889 = vld [vmem:[%s884 + $0x10] sm:$0xf]
    %v890 = vld [vmem:[%s884 + $0x14] sm:$0xf]
    %v891 = vld [vmem:[%s884 + $0x18] sm:$0xf]
    %v892 = vld [vmem:[%s884 + $0x1c] sm:$0xf]
    %v893 = vld [vmem:[%s884 + $0x20] sm:$0xf]
    %v894 = vld [vmem:[%s884 + $0x24] sm:$0xf]
    %v895 = vld [vmem:[%s884 + $0x28] sm:$0xf]
    %v896 = vld [vmem:[%s884 + $0x2c] sm:$0xf]
    %v897 = vld [vmem:[%s884 + $0x30] sm:$0xf]
    %v898 = vld [vmem:[%s884 + $0x34] sm:$0xf]
    %v899 = vld [vmem:[%s884 + $0x38] sm:$0xf]
    %v900 = vld [vmem:[%s884 + $0x3c] sm:$0xf]
    %s901 = scalar_lea.vmem [#allocation7], 3
    %v902 = vld [vmem:[%s901] sm:$0x1]
    %v904 = vperm.slane %v902, 0
    %v922 = vunpack.c.l.b16 %v885
    %v923 = vunpack.c.l.b16 %v886
    %v924 = vunpack.c.l.b16 %v887
    %v925 = vunpack.c.l.b16 %v888
    %v926 = vunpack.c.l.b16 %v889
    %v927 = vunpack.c.l.b16 %v890
    %v928 = vunpack.c.l.b16 %v891
    %v929 = vunpack.c.l.b16 %v892
    %v930 = vunpack.c.l.b16 %v893
    %v931 = vunpack.c.l.b16 %v894
    %v932 = vunpack.c.l.b16 %v895
    %v933 = vunpack.c.l.b16 %v896
    %v934 = vunpack.c.l.b16 %v897
    %v935 = vunpack.c.l.b16 %v898
    %v936 = vunpack.c.l.b16 %v899
    %v937 = vunpack.c.l.b16 %v900
    %v938 = vpack.c.b16 %v923, %v922
    %v939 = vpack.c.b16 %v925, %v924
    %v940 = vpack.c.b16 %v927, %v926
    %v941 = vpack.c.b16 %v929, %v928
    %v942 = vpack.c.b16 %v931, %v930
    %v943 = vpack.c.b16 %v933, %v932
    %v944 = vpack.c.b16 %v935, %v934
    %v945 = vpack.c.b16 %v937, %v936
    %954 = vmatpush.bf16.msra.mxu0 %v945
    %955 = vmatpush.bf16.msra.mxu0 %v944
    %956 = vmatpush.bf16.msra.mxu0 %v943
    %957 = vmatpush.bf16.msra.mxu0 %v942
    %958 = vmatpush.bf16.msra.mxu0 %v941
    %959 = vmatpush.bf16.msra.mxu0 %v940
    %960 = vmatpush.bf16.msra.mxu0 %v939
    %961 = vmatpush.bf16.msra.mxu0 %v938
    %962 = vmatmul.bf16.gmra.mxu0 %v883
    %v963 = vpop.f32.mrf.mxu0
    %v964 = vadd.f32 %v904, %v963
    %v965 = vpop.f32.mrf.mxu0
    %966 = vdwg.mxu0
    %v967 = vmax.f32 %v964, 0.0
    %v968 = vpack.c.bf16 %v967, %v967
    %s969 = scalar_lea.vmem [#allocation8], 192
    %v970 = vld [vmem:[%s969] sm:$0xf]
    %v971 = vld [vmem:[%s969 + $0x4] sm:$0xf]
    %v972 = vld [vmem:[%s969 + $0x8] sm:$0xf]
    %v973 = vld [vmem:[%s969 + $0xc] sm:$0xf]
    %v974 = vld [vmem:[%s969 + $0x10] sm:$0xf]
    %v975 = vld [vmem:[%s969 + $0x14] sm:$0xf]
    %v976 = vld [vmem:[%s969 + $0x18] sm:$0xf]
    %v977 = vld [vmem:[%s969 + $0x1c] sm:$0xf]
    %v978 = vld [vmem:[%s969 + $0x20] sm:$0xf]
    %v979 = vld [vmem:[%s969 + $0x24] sm:$0xf]
    %v980 = vld [vmem:[%s969 + $0x28] sm:$0xf]
    %v981 = vld [vmem:[%s969 + $0x2c] sm:$0xf]
    %v982 = vld [vmem:[%s969 + $0x30] sm:$0xf]
    %v983 = vld [vmem:[%s969 + $0x34] sm:$0xf]
    %v984 = vld [vmem:[%s969 + $0x38] sm:$0xf]
    %v985 = vld [vmem:[%s969 + $0x3c] sm:$0xf]
    %s986 = scalar_lea.vmem [#allocation10], 3
    %v987 = vld [vmem:[%s986] sm:$0x1]
    %v989 = vperm.slane %v987, 0
    %v1007 = vunpack.c.l.b16 %v970
    %v1008 = vunpack.c.l.b16 %v971
    %v1009 = vunpack.c.l.b16 %v972
    %v1010 = vunpack.c.l.b16 %v973
    %v1011 = vunpack.c.l.b16 %v974
    %v1012 = vunpack.c.l.b16 %v975
    %v1013 = vunpack.c.l.b16 %v976
    %v1014 = vunpack.c.l.b16 %v977
    %v1015 = vunpack.c.l.b16 %v978
    %v1016 = vunpack.c.l.b16 %v979
    %v1017 = vunpack.c.l.b16 %v980
    %v1018 = vunpack.c.l.b16 %v981
    %v1019 = vunpack.c.l.b16 %v982
    %v1020 = vunpack.c.l.b16 %v983
    %v1021 = vunpack.c.l.b16 %v984
    %v1022 = vunpack.c.l.b16 %v985
    %v1023 = vpack.c.b16 %v1008, %v1007
    %v1024 = vpack.c.b16 %v1010, %v1009
    %v1025 = vpack.c.b16 %v1012, %v1011
    %v1026 = vpack.c.b16 %v1014, %v1013
    %v1027 = vpack.c.b16 %v1016, %v1015
    %v1028 = vpack.c.b16 %v1018, %v1017
    %v1029 = vpack.c.b16 %v1020, %v1019
    %v1030 = vpack.c.b16 %v1022, %v1021
    %1039 = vmatpush.bf16.msra.mxu0 %v1030
    %1040 = vmatpush.bf16.msra.mxu0 %v1029
    %1041 = vmatpush.bf16.msra.mxu0 %v1028
    %1042 = vmatpush.bf16.msra.mxu0 %v1027
    %1043 = vmatpush.bf16.msra.mxu0 %v1026
    %1044 = vmatpush.bf16.msra.mxu0 %v1025
    %1045 = vmatpush.bf16.msra.mxu0 %v1024
    %1046 = vmatpush.bf16.msra.mxu0 %v1023
    %1047 = vmatmul.bf16.gmra.mxu0 %v968
    %v1048 = vpop.f32.mrf.mxu0
    %v1049 = vadd.f32 %v989, %v1048
    %v1050 = vpop.f32.mrf.mxu0
    %1051 = vdwg.mxu0
    %v1052 = vmax.f32 %v1049, 0.0
    %v1053 = vpack.c.bf16 %v1052, %v1052
    %s1054 = scalar_lea.vmem [#allocation11], 192
    %v1055 = vld [vmem:[%s1054] sm:$0xf]
    %v1056 = vld [vmem:[%s1054 + $0x4] sm:$0xf]
    %v1057 = vld [vmem:[%s1054 + $0x8] sm:$0xf]
    %v1058 = vld [vmem:[%s1054 + $0xc] sm:$0xf]
    %v1059 = vld [vmem:[%s1054 + $0x10] sm:$0xf]
    %v1060 = vld [vmem:[%s1054 + $0x14] sm:$0xf]
    %v1061 = vld [vmem:[%s1054 + $0x18] sm:$0xf]
    %v1062 = vld [vmem:[%s1054 + $0x1c] sm:$0xf]
    %v1063 = vld [vmem:[%s1054 + $0x20] sm:$0xf]
    %v1064 = vld [vmem:[%s1054 + $0x24] sm:$0xf]
    %v1065 = vld [vmem:[%s1054 + $0x28] sm:$0xf]
    %v1066 = vld [vmem:[%s1054 + $0x2c] sm:$0xf]
    %v1067 = vld [vmem:[%s1054 + $0x30] sm:$0xf]
    %v1068 = vld [vmem:[%s1054 + $0x34] sm:$0xf]
    %v1069 = vld [vmem:[%s1054 + $0x38] sm:$0xf]
    %v1070 = vld [vmem:[%s1054 + $0x3c] sm:$0xf]
    %s1071 = scalar_lea.vmem %s6, 3
    %v1072 = vld [vmem:[%s1071] sm:$0x1]
    %v1074 = vperm.slane %v1072, 0
    %v1092 = vunpack.c.l.b16 %v1055
    %v1093 = vunpack.c.l.b16 %v1056
    %v1094 = vunpack.c.l.b16 %v1057
    %v1095 = vunpack.c.l.b16 %v1058
    %v1096 = vunpack.c.l.b16 %v1059
    %v1097 = vunpack.c.l.b16 %v1060
    %v1098 = vunpack.c.l.b16 %v1061
    %v1099 = vunpack.c.l.b16 %v1062
    %v1100 = vunpack.c.l.b16 %v1063
    %v1101 = vunpack.c.l.b16 %v1064
    %v1102 = vunpack.c.l.b16 %v1065
    %v1103 = vunpack.c.l.b16 %v1066
    %v1104 = vunpack.c.l.b16 %v1067
    %v1105 = vunpack.c.l.b16 %v1068
    %v1106 = vunpack.c.l.b16 %v1069
    %v1107 = vunpack.c.l.b16 %v1070
    %v1108 = vpack.c.b16 %v1093, %v1092
    %v1109 = vpack.c.b16 %v1095, %v1094
    %v1110 = vpack.c.b16 %v1097, %v1096
    %v1111 = vpack.c.b16 %v1099, %v1098
    %v1112 = vpack.c.b16 %v1101, %v1100
    %v1113 = vpack.c.b16 %v1103, %v1102
    %v1114 = vpack.c.b16 %v1105, %v1104
    %v1115 = vpack.c.b16 %v1107, %v1106
    %1124 = vmatpush.bf16.msra.mxu0 %v1115
    %1125 = vmatpush.bf16.msra.mxu0 %v1114
    %1126 = vmatpush.bf16.msra.mxu0 %v1113
    %1127 = vmatpush.bf16.msra.mxu0 %v1112
    %1128 = vmatpush.bf16.msra.mxu0 %v1111
    %1129 = vmatpush.bf16.msra.mxu0 %v1110
    %1130 = vmatpush.bf16.msra.mxu0 %v1109
    %1131 = vmatpush.bf16.msra.mxu0 %v1108
    %1132 = vmatmul.bf16.gmra.mxu0 %v1053
    %v1133 = vpop.f32.mrf.mxu0
    %v1134 = vadd.f32 %v1074, %v1133
    %v1135 = vpop.f32.mrf.mxu0
    %1136 = vdwg.mxu0
    %v1137 = vadd.f32 %v627, %v1134
    %v1138 = vld [vmem:[%s7] sm:$0x1]
    %v1140 = vperm.slane %v1138, 0
    %v1142 = vmul.f32 %v1137, %v1140
    %1143 = vst [vmem:[#allocation13] sm:$0xff] %v1142
    %v1144 = vld [vmem:[%s7 + $0x1] sm:$0x1]
    %v1146 = vperm.slane %v1144, 0
    %v1148 = vmul.f32 %v882, %v1146
    %1149 = vst [vmem:[#allocation13 + $0x8] sm:$0xff] %v1148
    // Predicated region
    $region58: #{tpu_custom_call.1} parent=1 // pred_check
      _
    $region59: #{tpu_custom_call.1} parent=1 // pred_check_branch
      %1151 = sbr.rel (0) target = $region61
    $region60: #{tpu_custom_call.1} parent=1 // pred_region
      %1153 = vsyncadd [#allocation4], 0
      %s1155 = sshll.u32 [#allocation13], 4
      %s1156 = int_to_ptr.vmem [resolvable:$true] %s1155
      %s1157 = sshll.u32 %s8, 4
      %s1158 = int_to_ptr.hbm [resolvable:$true] %s1157
      %1160 = dma.vmem_to_hbm [thread:$0]  %s1156, 256, %s1158, [#allocation4]
    $region61: #{tpu_custom_call.1} parent=1 // pred_fallthru
      _
    // Predicated region
    $region62: #{tpu_custom_call.1} parent=1 // pred_check
      _
    $region63: #{tpu_custom_call.1} parent=1 // pred_check_branch
      %1162 = sbr.rel (0) target = $region65
    $region64: #{tpu_custom_call.1} parent=1 // pred_region
      %1164 = dma.done [#allocation4], 256
    $region65: #{tpu_custom_call.1} parent=1 // pred_fallthru
      _
    %1165 = vsyncpa [#allocation3], 1
    %1166 = vsyncpa [#allocation6], 1
    %1167 = vsyncpa [#allocation9], 1
    %1168 = vsyncpa [#allocation12], 1
    %1169 = vsyncpa [#allocation4], 1

// kernel: tpu_custom_call.1
$region0: #{tpu_custom_call.1}
  #allocation0 [shape = 'u32[]', space=smem, size = 0x4, offset = 0x4, fixed_abs, tag = 'smem constant byte address 0x4 - core index']
  #allocation1 [shape = 'u32[72,128]{1,0:T(1,128)}', space=vmem, size = 0x9000, scoped, tag = 'internal scratch']
  %s0 = inlined_call_operand.hbm [shape: f32[8,256], index: 0, kind: input, shape index: {}]
  %s1 = inlined_call_operand.hbm [shape: bf16[4,128,128], index: 1, kind: input, shape index: {}]
  %s2 = inlined_call_operand.hbm [shape: f32[4,1,128], index: 2, kind: input, shape index: {}]
  %s3 = inlined_call_operand.hbm [shape: bf16[4,128,128], index: 3, kind: input, shape index: {}]
  %s4 = inlined_call_operand.hbm [shape: f32[4,1,128], index: 4, kind: input, shape index: {}]
  %s5 = inlined_call_operand.hbm [shape: bf16[4,128,128], index: 5, kind: input, shape index: {}]
  %s6 = inlined_call_operand.vmem [shape: f32[4,1,128], index: 6, kind: input, shape index: {}]
  %s7 = inlined_call_operand.vmem [shape: f32[1,256], index: 7, kind: input, shape index: {}]
  %s8 = inlined_call_operand.hbm [shape: f32[8,256], index: 8, kind: output, shape index: {}]
  %s9 = sld [smem:[#allocation0]]
  $region66: #{tpu_custom_call.1} parent=0
    _
  %s11 = ssub.s32 1, %s9
  %s12 = scalar_select 0, %s11, %s9
  $region1: #{tpu_custom_call.1} parent=0
    #allocation2 [shape = 'u8[8192]{0}', space=vmem, size = 0x2000, scoped, tag = 'input window, operand 0, single buffered']
    #allocation3 [shape = 's32[1]{0}', space=sflag, size = 0x4, scoped, tag = 'scoped memory for tpu_custom_call.1']
    #allocation4 [shape = 's32[1]{0}', space=sflag, size = 0x4, scoped, tag = 'scoped memory for tpu_custom_call.1']
    #allocation5 [shape = 'u8[131072]{0}', space=vmem, size = 0x20000, scoped, tag = 'input window, operand 1, single buffered']
    #allocation6 [shape = 's32[1]{0}', space=sflag, size = 0x4, scoped, tag = 'scoped memory for tpu_custom_call.1']
    #allocation7 [shape = 'u8[2048]{0}', space=vmem, size = 0x800, scoped, tag = 'input window, operand 2, single buffered']
    #allocation8 [shape = 'u8[131072]{0}', space=vmem, size = 0x20000, scoped, tag = 'input window, operand 3, single buffered']
    #allocation9 [shape = 's32[1]{0}', space=sflag, size = 0x4, scoped, tag = 'scoped memory for tpu_custom_call.1']
    #allocation10 [shape = 'u8[2048]{0}', space=vmem, size = 0x800, scoped, tag = 'input window, operand 4, single buffered']
    #allocation11 [shape = 'u8[131072]{0}', space=vmem, size = 0x20000, scoped, tag = 'input window, operand 5, single buffered']
    #allocation12 [shape = 's32[1]{0}', space=sflag, size = 0x4, scoped, tag = 'scoped memory for tpu_custom_call.1']
    #allocation13 [shape = 'u8[8192]{0}', space=vmem, size = 0x2000, scoped, tag = 'output window, operand 0, single buffered']
    %13 = vsyncpa [#allocation3], 0
    %14 = vsyncpa [#allocation6], 0
    %15 = vsyncpa [#allocation9], 0
    %16 = vsyncpa [#allocation12], 0
    %17 = vsyncpa [#allocation4], 0
    // Predicated region
    $region2: #{tpu_custom_call.1} parent=1 // pred_check
      _
    $region3: #{tpu_custom_call.1} parent=1 // pred_check_branch
      %19 = sbr.rel (0) target = $region5
    $region4: #{tpu_custom_call.1} parent=1 // pred_region
      %21 = vsyncadd [#allocation3], 0
      %s23 = sshll.u32 %s0, 4
      %s24 = int_to_ptr.hbm [resolvable:$true] %s23
      %s25 = sshll.u32 [#allocation2], 4
      %s26 = int_to_ptr.vmem [resolvable:$true] %s25
      %28 = dma.hbm_to_vmem [thread:$0]  %s24, 256, %s26, [#allocation3]
    $region5: #{tpu_custom_call.1} parent=1 // pred_fallthru
      _
    // Predicated region
    $region6: #{tpu_custom_call.1} parent=1 // pred_check
      _
    $region7: #{tpu_custom_call.1} parent=1 // pred_check_branch
      %30 = sbr.rel (0) target = $region9
    $region8: #{tpu_custom_call.1} parent=1 // pred_region
      %32 = vsyncadd [#allocation6], 0
      %s33 = sshll.u32 %s1, 4
      %s34 = int_to_ptr.hbm [resolvable:$true] %s33
      %s35 = sshll.u32 [#allocation5], 4
      %s36 = int_to_ptr.vmem [resolvable:$true] %s35
      %41 = dma.hbm_to_vmem [thread:$0]  %s34, 4096, %s36, [#allocation6], 64, 64, 4
    $region9: #{tpu_custom_call.1} parent=1 // pred_fallthru
      _
    // Predicated region
    $region10: #{tpu_custom_call.1} parent=1 // pred_check
      _
    $region11: #{tpu_custom_call.1} parent=1 // pred_check_branch
      %43 = sbr.rel (0) target = $region13
    $region12: #{tpu_custom_call.1} parent=1 // pred_region
      %45 = vsyncadd [#allocation6], 0
      %s46 = sshll.u32 %s2, 4
      %s47 = int_to_ptr.hbm [resolvable:$true] %s46
      %s48 = sshll.u32 [#allocation7], 4
      %s49 = int_to_ptr.vmem [resolvable:$true] %s48
      %54 = dma.hbm_to_vmem [thread:$0]  %s47, 64, %s49, [#allocation6], 16, 16, 1
    $region13: #{tpu_custom_call.1} parent=1 // pred_fallthru
      _
    // Predicated region
    $region14: #{tpu_custom_call.1} parent=1 // pred_check
      _
    $region15: #{tpu_custom_call.1} parent=1 // pred_check_branch
      %56 = sbr.rel (0) target = $region17
    $region16: #{tpu_custom_call.1} parent=1 // pred_region
      %58 = vsyncadd [#allocation9], 0
      %s59 = sshll.u32 %s3, 4
      %s60 = int_to_ptr.hbm [resolvable:$true] %s59
      %s61 = sshll.u32 [#allocation8], 4
      %s62 = int_to_ptr.vmem [resolvable:$true] %s61
      %67 = dma.hbm_to_vmem [thread:$0]  %s60, 4096, %s62, [#allocation9], 64, 64, 4
    $region17: #{tpu_custom_call.1} parent=1 // pred_fallthru
      _
    // Predicated region
    $region18: #{tpu_custom_call.1} parent=1 // pred_check
      _
    $region19: #{tpu_custom_call.1} parent=1 // pred_check_branch
      %69 = sbr.rel (0) target = $region21
    $region20: #{tpu_custom_call.1} parent=1 // pred_region
      %71 = vsyncadd [#allocation9], 0
      %s72 = sshll.u32 %s4, 4
      %s73 = int_to_ptr.hbm [resolvable:$true] %s72
      %s74 = sshll.u32 [#allocation10], 4
      %s75 = int_to_ptr.vmem [resolvable:$true] %s74
      %80 = dma.hbm_to_vmem [thread:$0]  %s73, 64, %s75, [#allocation9], 16, 16, 1
    $region21: #{tpu_custom_call.1} parent=1 // pred_fallthru
      _
    // Predicated region
    $region22: #{tpu_custom_call.1} parent=1 // pred_check
      _
    $region23: #{tpu_custom_call.1} parent=1 // pred_check_branch
      %82 = sbr.rel (0) target = $region25
    $region24: #{tpu_custom_call.1} parent=1 // pred_region
      %84 = vsyncadd [#allocation12], 0
      %s85 = sshll.u32 %s5, 4
      %s86 = int_to_ptr.hbm [resolvable:$true] %s85
      %s87 = sshll.u32 [#allocation11], 4
      %s88 = int_to_ptr.vmem [resolvable:$true] %s87
      %93 = dma.hbm_to_vmem [thread:$0]  %s86, 4096, %s88, [#allocation12], 64, 64, 4
    $region25: #{tpu_custom_call.1} parent=1 // pred_fallthru
      _
    // Predicated region
    $region26: #{tpu_custom_call.1} parent=1 // pred_check
      _
    $region27: #{tpu_custom_call.1} parent=1 // pred_check_branch
      %95 = sbr.rel (0) target = $region29
    $region28: #{tpu_custom_call.1} parent=1 // pred_region
      _
    $region29: #{tpu_custom_call.1} parent=1 // pred_fallthru
      _
    // Predicated region
    $region30: #{tpu_custom_call.1} parent=1 // pred_check
      _
    $region31: #{tpu_custom_call.1} parent=1 // pred_check_branch
      %97 = sbr.rel (0) target = $region33
    $region32: #{tpu_custom_call.1} parent=1 // pred_region
      _
    $region33: #{tpu_custom_call.1} parent=1 // pred_fallthru
      _
    // Predicated region
    $region34: #{tpu_custom_call.1} parent=1 // pred_check
      _
    $region35: #{tpu_custom_call.1} parent=1 // pred_check_branch
      %99 = sbr.rel (0) target = $region37
    $region36: #{tpu_custom_call.1} parent=1 // pred_region
      %101 = dma.done [#allocation3], 256
    $region37: #{tpu_custom_call.1} parent=1 // pred_fallthru
      _
    // Predicated region
    $region38: #{tpu_custom_call.1} parent=1 // pred_check
      _
    $region39: #{tpu_custom_call.1} parent=1 // pred_check_branch
      %103 = sbr.rel (0) target = $region41
    $region40: #{tpu_custom_call.1} parent=1 // pred_region
      %105 = dma.done [#allocation6], 4096
    $region41: #{tpu_custom_call.1} parent=1 // pred_fallthru
      _
    // Predicated region
    $region42: #{tpu_custom_call.1} parent=1 // pred_check
      _
    $region43: #{tpu_custom_call.1} parent=1 // pred_check_branch
      %107 = sbr.rel (0) target = $region45
    $region44: #{tpu_custom_call.1} parent=1 // pred_region
      %109 = dma.done [#allocation6], 64
    $region45: #{tpu_custom_call.1} parent=1 // pred_fallthru
      _
    // Predicated region
    $region46: #{tpu_custom_call.1} parent=1 // pred_check
      _
    $region47: #{tpu_custom_call.1} parent=1 // pred_check_branch
      %111 = sbr.rel (0) target = $region49
    $region48: #{tpu_custom_call.1} parent=1 // pred_region
      %113 = dma.done [#allocation9], 4096
    $region49: #{tpu_custom_call.1} parent=1 // pred_fallthru
      _
    // Predicated region
    $region50: #{tpu_custom_call.1} parent=1 // pred_check
      _
    $region51: #{tpu_custom_call.1} parent=1 // pred_check_branch
      %115 = sbr.rel (0) target = $region53
    $region52: #{tpu_custom_call.1} parent=1 // pred_region
      %117 = dma.done [#allocation9], 64
    $region53: #{tpu_custom_call.1} parent=1 // pred_fallthru
      _
    // Predicated region
    $region54: #{tpu_custom_call.1} parent=1 // pred_check
      _
    $region55: #{tpu_custom_call.1} parent=1 // pred_check_branch
      %119 = sbr.rel (0) target = $region57
    $region56: #{tpu_custom_call.1} parent=1 // pred_region
      %121 = dma.done [#allocation12], 4096
    $region57: #{tpu_custom_call.1} parent=1 // pred_fallthru
      _
    %v122 = vld [vmem:[#allocation2] sm:$0xff]
    %v123 = vld [vmem:[#allocation2 + $0x8] sm:$0xff]
    %v124 = vpack.c.bf16 %v122, %v122
    %v125 = vld [vmem:[#allocation5] sm:$0xf]
    %v126 = vld [vmem:[#allocation5 + $0x4] sm:$0xf]
    %v127 = vld [vmem:[#allocation5 + $0x8] sm:$0xf]
    %v128 = vld [vmem:[#allocation5 + $0xc] sm:$0xf]
    %v129 = vld [vmem:[#allocation5 + $0x10] sm:$0xf]
    %v130 = vld [vmem:[#allocation5 + $0x14] sm:$0xf]
    %v131 = vld [vmem:[#allocation5 + $0x18] sm:$0xf]
    %v132 = vld [vmem:[#allocation5 + $0x1c] sm:$0xf]
    %v133 = vld [vmem:[#allocation5 + $0x20] sm:$0xf]
    %v134 = vld [vmem:[#allocation5 + $0x24] sm:$0xf]
    %v135 = vld [vmem:[#allocation5 + $0x28] sm:$0xf]
    %v136 = vld [vmem:[#allocation5 + $0x2c] sm:$0xf]
    %v137 = vld [vmem:[#allocation5 + $0x30] sm:$0xf]
    %v138 = vld [vmem:[#allocation5 + $0x34] sm:$0xf]
    %v139 = vld [vmem:[#allocation5 + $0x38] sm:$0xf]
    %v140 = vld [vmem:[#allocation5 + $0x3c] sm:$0xf]
    %v141 = vld [vmem:[#allocation7] sm:$0x1]
    %v143 = vperm.slane %v141, 0
    %v161 = vunpack.c.l.b16 %v125
    %v162 = vunpack.c.l.b16 %v126
    %v163 = vunpack.c.l.b16 %v127
    %v164 = vunpack.c.l.b16 %v128
    %v165 = vunpack.c.l.b16 %v129
    %v166 = vunpack.c.l.b16 %v130
    %v167 = vunpack.c.l.b16 %v131
    %v168 = vunpack.c.l.b16 %v132
    %v169 = vunpack.c.l.b16 %v133
    %v170 = vunpack.c.l.b16 %v134
    %v171 = vunpack.c.l.b16 %v135
    %v172 = vunpack.c.l.b16 %v136
    %v173 = vunpack.c.l.b16 %v137
    %v174 = vunpack.c.l.b16 %v138
    %v175 = vunpack.c.l.b16 %v139
    %v176 = vunpack.c.l.b16 %v140
    %v177 = vpack.c.b16 %v162, %v161
    %v178 = vpack.c.b16 %v164, %v163
    %v179 = vpack.c.b16 %v166, %v165
    %v180 = vpack.c.b16 %v168, %v167
    %v181 = vpack.c.b16 %v170, %v169
    %v182 = vpack.c.b16 %v172, %v171
    %v183 = vpack.c.b16 %v174, %v173
    %v184 = vpack.c.b16 %v176, %v175
    %193 = vmatpush.bf16.msra.mxu0 %v184
    %194 = vmatpush.bf16.msra.mxu0 %v183
    %195 = vmatpush.bf16.msra.mxu0 %v182
    %196 = vmatpush.bf16.msra.mxu0 %v181
    %197 = vmatpush.bf16.msra.mxu0 %v180
    %198 = vmatpush.bf16.msra.mxu0 %v179
    %199 = vmatpush.bf16.msra.mxu0 %v178
    %200 = vmatpush.bf16.msra.mxu0 %v177
    %201 = vmatmul.bf16.gmra.mxu0 %v124
    %v202 = vpop.f32.mrf.mxu0
    %v203 = vadd.f32 %v143, %v202
    %v204 = vpop.f32.mrf.mxu0
    %205 = vdwg.mxu0
    %v206 = vmax.f32 %v203, 0.0
    %v207 = vpack.c.bf16 %v206, %v206
    %v208 = vld [vmem:[#allocation8] sm:$0xf]
    %v209 = vld [vmem:[#allocation8 + $0x4] sm:$0xf]
    %v210 = vld [vmem:[#allocation8 + $0x8] sm:$0xf]
    %v211 = vld [vmem:[#allocation8 + $0xc] sm:$0xf]
    %v212 = vld [vmem:[#allocation8 + $0x10] sm:$0xf]
    %v213 = vld [vmem:[#allocation8 + $0x14] sm:$0xf]
    %v214 = vld [vmem:[#allocation8 + $0x18] sm:$0xf]
    %v215 = vld [vmem:[#allocation8 + $0x1c] sm:$0xf]
    %v216 = vld [vmem:[#allocation8 + $0x20] sm:$0xf]
    %v217 = vld [vmem:[#allocation8 + $0x24] sm:$0xf]
    %v218 = vld [vmem:[#allocation8 + $0x28] sm:$0xf]
    %v219 = vld [vmem:[#allocation8 + $0x2c] sm:$0xf]
    %v220 = vld [vmem:[#allocation8 + $0x30] sm:$0xf]
    %v221 = vld [vmem:[#allocation8 + $0x34] sm:$0xf]
    %v222 = vld [vmem:[#allocation8 + $0x38] sm:$0xf]
    %v223 = vld [vmem:[#allocation8 + $0x3c] sm:$0xf]
    %v224 = vld [vmem:[#allocation10] sm:$0x1]
    %v226 = vperm.slane %v224, 0
    %v244 = vunpack.c.l.b16 %v208
    %v245 = vunpack.c.l.b16 %v209
    %v246 = vunpack.c.l.b16 %v210
    %v247 = vunpack.c.l.b16 %v211
    %v248 = vunpack.c.l.b16 %v212
    %v249 = vunpack.c.l.b16 %v213
    %v250 = vunpack.c.l.b16 %v214
    %v251 = vunpack.c.l.b16 %v215
    %v252 = vunpack.c.l.b16 %v216
    %v253 = vunpack.c.l.b16 %v217
    %v254 = vunpack.c.l.b16 %v218
    %v255 = vunpack.c.l.b16 %v219
    %v256 = vunpack.c.l.b16 %v220
    %v257 = vunpack.c.l.b16 %v221
    %v258 = vunpack.c.l.b16 %v222
    %v259 = vunpack.c.l.b16 %v223
    %v260 = vpack.c.b16 %v245, %v244
    %v261 = vpack.c.b16 %v247, %v246
    %v262 = vpack.c.b16 %v249, %v248
    %v263 = vpack.c.b16 %v251, %v250
    %v264 = vpack.c.b16 %v253, %v252
    %v265 = vpack.c.b16 %v255, %v254
    %v266 = vpack.c.b16 %v257, %v256
    %v267 = vpack.c.b16 %v259, %v258
    %276 = vmatpush.bf16.msra.mxu0 %v267
    %277 = vmatpush.bf16.msra.mxu0 %v266
    %278 = vmatpush.bf16.msra.mxu0 %v265
    %279 = vmatpush.bf16.msra.mxu0 %v264
    %280 = vmatpush.bf16.msra.mxu0 %v263
    %281 = vmatpush.bf16.msra.mxu0 %v262
    %282 = vmatpush.bf16.msra.mxu0 %v261
    %283 = vmatpush.bf16.msra.mxu0 %v260
    %284 = vmatmul.bf16.gmra.mxu0 %v207
    %v285 = vpop.f32.mrf.mxu0
    %v286 = vadd.f32 %v226, %v285
    %v287 = vpop.f32.mrf.mxu0
    %288 = vdwg.mxu0
    %v289 = vmax.f32 %v286, 0.0
    %v290 = vpack.c.bf16 %v289, %v289
    %v291 = vld [vmem:[#allocation11] sm:$0xf]
    %v292 = vld [vmem:[#allocation11 + $0x4] sm:$0xf]
    %v293 = vld [vmem:[#allocation11 + $0x8] sm:$0xf]
    %v294 = vld [vmem:[#allocation11 + $0xc] sm:$0xf]
    %v295 = vld [vmem:[#allocation11 + $0x10] sm:$0xf]
    %v296 = vld [vmem:[#allocation11 + $0x14] sm:$0xf]
    %v297 = vld [vmem:[#allocation11 + $0x18] sm:$0xf]
    %v298 = vld [vmem:[#allocation11 + $0x1c] sm:$0xf]
    %v299 = vld [vmem:[#allocation11 + $0x20] sm:$0xf]
    %v300 = vld [vmem:[#allocation11 + $0x24] sm:$0xf]
    %v301 = vld [vmem:[#allocation11 + $0x28] sm:$0xf]
    %v302 = vld [vmem:[#allocation11 + $0x2c] sm:$0xf]
    %v303 = vld [vmem:[#allocation11 + $0x30] sm:$0xf]
    %v304 = vld [vmem:[#allocation11 + $0x34] sm:$0xf]
    %v305 = vld [vmem:[#allocation11 + $0x38] sm:$0xf]
    %v306 = vld [vmem:[#allocation11 + $0x3c] sm:$0xf]
    %v307 = vld [vmem:[%s6] sm:$0x1]
    %v309 = vperm.slane %v307, 0
    %v327 = vunpack.c.l.b16 %v291
    %v328 = vunpack.c.l.b16 %v292
    %v329 = vunpack.c.l.b16 %v293
    %v330 = vunpack.c.l.b16 %v294
    %v331 = vunpack.c.l.b16 %v295
    %v332 = vunpack.c.l.b16 %v296
    %v333 = vunpack.c.l.b16 %v297
    %v334 = vunpack.c.l.b16 %v298
    %v335 = vunpack.c.l.b16 %v299
    %v336 = vunpack.c.l.b16 %v300
    %v337 = vunpack.c.l.b16 %v301
    %v338 = vunpack.c.l.b16 %v302
    %v339 = vunpack.c.l.b16 %v303
    %v340 = vunpack.c.l.b16 %v304
    %v341 = vunpack.c.l.b16 %v305
    %v342 = vunpack.c.l.b16 %v306
    %v343 = vpack.c.b16 %v328, %v327
    %v344 = vpack.c.b16 %v330, %v329
    %v345 = vpack.c.b16 %v332, %v331
    %v346 = vpack.c.b16 %v334, %v333
    %v347 = vpack.c.b16 %v336, %v335
    %v348 = vpack.c.b16 %v338, %v337
    %v349 = vpack.c.b16 %v340, %v339
    %v350 = vpack.c.b16 %v342, %v341
    %359 = vmatpush.bf16.msra.mxu0 %v350
    %360 = vmatpush.bf16.msra.mxu0 %v349
    %361 = vmatpush.bf16.msra.mxu0 %v348
    %362 = vmatpush.bf16.msra.mxu0 %v347
    %363 = vmatpush.bf16.msra.mxu0 %v346
    %364 = vmatpush.bf16.msra.mxu0 %v345
    %365 = vmatpush.bf16.msra.mxu0 %v344
    %366 = vmatpush.bf16.msra.mxu0 %v343
    %367 = vmatmul.bf16.gmra.mxu0 %v290
    %v368 = vpop.f32.mrf.mxu0
    %v369 = vadd.f32 %v309, %v368
    %v370 = vpop.f32.mrf.mxu0
    %371 = vdwg.mxu0
    %v372 = vadd.f32 %v123, %v369
    %v373 = vpack.c.bf16 %v372, %v372
    %s374 = scalar_lea.vmem [#allocation5], 64
    %v375 = vld [vmem:[%s374] sm:$0xf]
    %v376 = vld [vmem:[%s374 + $0x4] sm:$0xf]
    %v377 = vld [vmem:[%s374 + $0x8] sm:$0xf]
    %v378 = vld [vmem:[%s374 + $0xc] sm:$0xf]
    %v379 = vld [vmem:[%s374 + $0x10] sm:$0xf]
    %v380 = vld [vmem:[%s374 + $0x14] sm:$0xf]
    %v381 = vld [vmem:[%s374 + $0x18] sm:$0xf]
    %v382 = vld [vmem:[%s374 + $0x1c] sm:$0xf]
    %v383 = vld [vmem:[%s374 + $0x20] sm:$0xf]
    %v384 = vld [vmem:[%s374 + $0x24] sm:$0xf]
    %v385 = vld [vmem:[%s374 + $0x28] sm:$0xf]
    %v386 = vld [vmem:[%s374 + $0x2c] sm:$0xf]
    %v387 = vld [vmem:[%s374 + $0x30] sm:$0xf]
    %v388 = vld [vmem:[%s374 + $0x34] sm:$0xf]
    %v389 = vld [vmem:[%s374 + $0x38] sm:$0xf]
    %v390 = vld [vmem:[%s374 + $0x3c] sm:$0xf]
    %s391 = scalar_lea.vmem [#allocation7], 1
    %v392 = vld [vmem:[%s391] sm:$0x1]
    %v394 = vperm.slane %v392, 0
    %v412 = vunpack.c.l.b16 %v375
    %v413 = vunpack.c.l.b16 %v376
    %v414 = vunpack.c.l.b16 %v377
    %v415 = vunpack.c.l.b16 %v378
    %v416 = vunpack.c.l.b16 %v379
    %v417 = vunpack.c.l.b16 %v380
    %v418 = vunpack.c.l.b16 %v381
    %v419 = vunpack.c.l.b16 %v382
    %v420 = vunpack.c.l.b16 %v383
    %v421 = vunpack.c.l.b16 %v384
    %v422 = vunpack.c.l.b16 %v385
    %v423 = vunpack.c.l.b16 %v386
    %v424 = vunpack.c.l.b16 %v387
    %v425 = vunpack.c.l.b16 %v388
    %v426 = vunpack.c.l.b16 %v389
    %v427 = vunpack.c.l.b16 %v390
    %v428 = vpack.c.b16 %v413, %v412
    %v429 = vpack.c.b16 %v415, %v414
    %v430 = vpack.c.b16 %v417, %v416
    %v431 = vpack.c.b16 %v419, %v418
    %v432 = vpack.c.b16 %v421, %v420
    %v433 = vpack.c.b16 %v423, %v422
    %v434 = vpack.c.b16 %v425, %v424
    %v435 = vpack.c.b16 %v427, %v426
    %444 = vmatpush.bf16.msra.mxu0 %v435
    %445 = vmatpush.bf16.msra.mxu0 %v434
    %446 = vmatpush.bf16.msra.mxu0 %v433
    %447 = vmatpush.bf16.msra.mxu0 %v432
    %448 = vmatpush.bf16.msra.mxu0 %v431
    %449 = vmatpush.bf16.msra.mxu0 %v430
    %450 = vmatpush.bf16.msra.mxu0 %v429
    %451 = vmatpush.bf16.msra.mxu0 %v428
    %452 = vmatmul.bf16.gmra.mxu0 %v373
    %v453 = vpop.f32.mrf.mxu0
    %v454 = vadd.f32 %v394, %v453
    %v455 = vpop.f32.mrf.mxu0
    %456 = vdwg.mxu0
    %v457 = vmax.f32 %v454, 0.0
    %v458 = vpack.c.bf16 %v457, %v457
    %s459 = scalar_lea.vmem [#allocation8], 64
    %v460 = vld [vmem:[%s459] sm:$0xf]
    %v461 = vld [vmem:[%s459 + $0x4] sm:$0xf]
    %v462 = vld [vmem:[%s459 + $0x8] sm:$0xf]
    %v463 = vld [vmem:[%s459 + $0xc] sm:$0xf]
    %v464 = vld [vmem:[%s459 + $0x10] sm:$0xf]
    %v465 = vld [vmem:[%s459 + $0x14] sm:$0xf]
    %v466 = vld [vmem:[%s459 + $0x18] sm:$0xf]
    %v467 = vld [vmem:[%s459 + $0x1c] sm:$0xf]
    %v468 = vld [vmem:[%s459 + $0x20] sm:$0xf]
    %v469 = vld [vmem:[%s459 + $0x24] sm:$0xf]
    %v470 = vld [vmem:[%s459 + $0x28] sm:$0xf]
    %v471 = vld [vmem:[%s459 + $0x2c] sm:$0xf]
    %v472 = vld [vmem:[%s459 + $0x30] sm:$0xf]
    %v473 = vld [vmem:[%s459 + $0x34] sm:$0xf]
    %v474 = vld [vmem:[%s459 + $0x38] sm:$0xf]
    %v475 = vld [vmem:[%s459 + $0x3c] sm:$0xf]
    %s476 = scalar_lea.vmem [#allocation10], 1
    %v477 = vld [vmem:[%s476] sm:$0x1]
    %v479 = vperm.slane %v477, 0
    %v497 = vunpack.c.l.b16 %v460
    %v498 = vunpack.c.l.b16 %v461
    %v499 = vunpack.c.l.b16 %v462
    %v500 = vunpack.c.l.b16 %v463
    %v501 = vunpack.c.l.b16 %v464
    %v502 = vunpack.c.l.b16 %v465
    %v503 = vunpack.c.l.b16 %v466
    %v504 = vunpack.c.l.b16 %v467
    %v505 = vunpack.c.l.b16 %v468
    %v506 = vunpack.c.l.b16 %v469
    %v507 = vunpack.c.l.b16 %v470
    %v508 = vunpack.c.l.b16 %v471
    %v509 = vunpack.c.l.b16 %v472
    %v510 = vunpack.c.l.b16 %v473
    %v511 = vunpack.c.l.b16 %v474
    %v512 = vunpack.c.l.b16 %v475
    %v513 = vpack.c.b16 %v498, %v497
    %v514 = vpack.c.b16 %v500, %v499
    %v515 = vpack.c.b16 %v502, %v501
    %v516 = vpack.c.b16 %v504, %v503
    %v517 = vpack.c.b16 %v506, %v505
    %v518 = vpack.c.b16 %v508, %v507
    %v519 = vpack.c.b16 %v510, %v509
    %v520 = vpack.c.b16 %v512, %v511
    %529 = vmatpush.bf16.msra.mxu0 %v520
    %530 = vmatpush.bf16.msra.mxu0 %v519
    %531 = vmatpush.bf16.msra.mxu0 %v518
    %532 = vmatpush.bf16.msra.mxu0 %v517
    %533 = vmatpush.bf16.msra.mxu0 %v516
    %534 = vmatpush.bf16.msra.mxu0 %v515
    %535 = vmatpush.bf16.msra.mxu0 %v514
    %536 = vmatpush.bf16.msra.mxu0 %v513
    %537 = vmatmul.bf16.gmra.mxu0 %v458
    %v538 = vpop.f32.mrf.mxu0
    %v539 = vadd.f32 %v479, %v538
    %v540 = vpop.f32.mrf.mxu0
    %541 = vdwg.mxu0
    %v542 = vmax.f32 %v539, 0.0
    %v543 = vpack.c.bf16 %v542, %v542
    %s544 = scalar_lea.vmem [#allocation11], 64
    %v545 = vld [vmem:[%s544] sm:$0xf]
    %v546 = vld [vmem:[%s544 + $0x4] sm:$0xf]
    %v547 = vld [vmem:[%s544 + $0x8] sm:$0xf]
    %v548 = vld [vmem:[%s544 + $0xc] sm:$0xf]
    %v549 = vld [vmem:[%s544 + $0x10] sm:$0xf]
    %v550 = vld [vmem:[%s544 + $0x14] sm:$0xf]
    %v551 = vld [vmem:[%s544 + $0x18] sm:$0xf]
    %v552 = vld [vmem:[%s544 + $0x1c] sm:$0xf]
    %v553 = vld [vmem:[%s544 + $0x20] sm:$0xf]
    %v554 = vld [vmem:[%s544 + $0x24] sm:$0xf]
    %v555 = vld [vmem:[%s544 + $0x28] sm:$0xf]
    %v556 = vld [vmem:[%s544 + $0x2c] sm:$0xf]
    %v557 = vld [vmem:[%s544 + $0x30] sm:$0xf]
    %v558 = vld [vmem:[%s544 + $0x34] sm:$0xf]
    %v559 = vld [vmem:[%s544 + $0x38] sm:$0xf]
    %v560 = vld [vmem:[%s544 + $0x3c] sm:$0xf]
    %s561 = scalar_lea.vmem %s6, 1
    %v562 = vld [vmem:[%s561] sm:$0x1]
    %v564 = vperm.slane %v562, 0
    %v582 = vunpack.c.l.b16 %v545
    %v583 = vunpack.c.l.b16 %v546
    %v584 = vunpack.c.l.b16 %v547
    %v585 = vunpack.c.l.b16 %v548
    %v586 = vunpack.c.l.b16 %v549
    %v587 = vunpack.c.l.b16 %v550
    %v588 = vunpack.c.l.b16 %v551
    %v589 = vunpack.c.l.b16 %v552
    %v590 = vunpack.c.l.b16 %v553
    %v591 = vunpack.c.l.b16 %v554
    %v592 = vunpack.c.l.b16 %v555
    %v593 = vunpack.c.l.b16 %v556
    %v594 = vunpack.c.l.b16 %v557
    %v595 = vunpack.c.l.b16 %v558
    %v596 = vunpack.c.l.b16 %v559
    %v597 = vunpack.c.l.b16 %v560
    %v598 = vpack.c.b16 %v583, %v582
    %v599 = vpack.c.b16 %v585, %v584
    %v600 = vpack.c.b16 %v587, %v586
    %v601 = vpack.c.b16 %v589, %v588
    %v602 = vpack.c.b16 %v591, %v590
    %v603 = vpack.c.b16 %v593, %v592
    %v604 = vpack.c.b16 %v595, %v594
    %v605 = vpack.c.b16 %v597, %v596
    %614 = vmatpush.bf16.msra.mxu0 %v605
    %615 = vmatpush.bf16.msra.mxu0 %v604
    %616 = vmatpush.bf16.msra.mxu0 %v603
    %617 = vmatpush.bf16.msra.mxu0 %v602
    %618 = vmatpush.bf16.msra.mxu0 %v601
    %619 = vmatpush.bf16.msra.mxu0 %v600
    %620 = vmatpush.bf16.msra.mxu0 %v599
    %621 = vmatpush.bf16.msra.mxu0 %v598
    %622 = vmatmul.bf16.gmra.mxu0 %v543
    %v623 = vpop.f32.mrf.mxu0
    %v624 = vadd.f32 %v564, %v623
    %v625 = vpop.f32.mrf.mxu0
    %626 = vdwg.mxu0
    %v627 = vadd.f32 %v122, %v624
    %v628 = vpack.c.bf16 %v627, %v627
    %s629 = scalar_lea.vmem [#allocation5], 128
    %v630 = vld [vmem:[%s629] sm:$0xf]
    %v631 = vld [vmem:[%s629 + $0x4] sm:$0xf]
    %v632 = vld [vmem:[%s629 + $0x8] sm:$0xf]
    %v633 = vld [vmem:[%s629 + $0xc] sm:$0xf]
    %v634 = vld [vmem:[%s629 + $0x10] sm:$0xf]
    %v635 = vld [vmem:[%s629 + $0x14] sm:$0xf]
    %v636 = vld [vmem:[%s629 + $0x18] sm:$0xf]
    %v637 = vld [vmem:[%s629 + $0x1c] sm:$0xf]
    %v638 = vld [vmem:[%s629 + $0x20] sm:$0xf]
    %v639 = vld [vmem:[%s629 + $0x24] sm:$0xf]
    %v640 = vld [vmem:[%s629 + $0x28] sm:$0xf]
    %v641 = vld [vmem:[%s629 + $0x2c] sm:$0xf]
    %v642 = vld [vmem:[%s629 + $0x30] sm:$0xf]
    %v643 = vld [vmem:[%s629 + $0x34] sm:$0xf]
    %v644 = vld [vmem:[%s629 + $0x38] sm:$0xf]
    %v645 = vld [vmem:[%s629 + $0x3c] sm:$0xf]
    %s646 = scalar_lea.vmem [#allocation7], 2
    %v647 = vld [vmem:[%s646] sm:$0x1]
    %v649 = vperm.slane %v647, 0
    %v667 = vunpack.c.l.b16 %v630
    %v668 = vunpack.c.l.b16 %v631
    %v669 = vunpack.c.l.b16 %v632
    %v670 = vunpack.c.l.b16 %v633
    %v671 = vunpack.c.l.b16 %v634
    %v672 = vunpack.c.l.b16 %v635
    %v673 = vunpack.c.l.b16 %v636
    %v674 = vunpack.c.l.b16 %v637
    %v675 = vunpack.c.l.b16 %v638
    %v676 = vunpack.c.l.b16 %v639
    %v677 = vunpack.c.l.b16 %v640
    %v678 = vunpack.c.l.b16 %v641
    %v679 = vunpack.c.l.b16 %v642
    %v680 = vunpack.c.l.b16 %v643
    %v681 = vunpack.c.l.b16 %v644
    %v682 = vunpack.c.l.b16 %v645
    %v683 = vpack.c.b16 %v668, %v667
    %v684 = vpack.c.b16 %v670, %v669
    %v685 = vpack.c.b16 %v672, %v671
    %v686 = vpack.c.b16 %v674, %v673
    %v687 = vpack.c.b16 %v676, %v675
    %v688 = vpack.c.b16 %v678, %v677
    %v689 = vpack.c.b16 %v680, %v679
    %v690 = vpack.c.b16 %v682, %v681
    %699 = vmatpush.bf16.msra.mxu0 %v690
    %700 = vmatpush.bf16.msra.mxu0 %v689
    %701 = vmatpush.bf16.msra.mxu0 %v688
    %702 = vmatpush.bf16.msra.mxu0 %v687
    %703 = vmatpush.bf16.msra.mxu0 %v686
    %704 = vmatpush.bf16.msra.mxu0 %v685
    %705 = vmatpush.bf16.msra.mxu0 %v684
    %706 = vmatpush.bf16.msra.mxu0 %v683
    %707 = vmatmul.bf16.gmra.mxu0 %v628
    %v708 = vpop.f32.mrf.mxu0
    %v709 = vadd.f32 %v649, %v708
    %v710 = vpop.f32.mrf.mxu0
    %711 = vdwg.mxu0
    %v712 = vmax.f32 %v709, 0.0
    %v713 = vpack.c.bf16 %v712, %v712
    %s714 = scalar_lea.vmem [#allocation8], 128
    %v715 = vld [vmem:[%s714] sm:$0xf]
    %v716 = vld [vmem:[%s714 + $0x4] sm:$0xf]
    %v717 = vld [vmem:[%s714 + $0x8] sm:$0xf]
    %v718 = vld [vmem:[%s714 + $0xc] sm:$0xf]
    %v719 = vld [vmem:[%s714 + $0x10] sm:$0xf]
    %v720 = vld [vmem:[%s714 + $0x14] sm:$0xf]
    %v721 = vld [vmem:[%s714 + $0x18] sm:$0xf]
    %v722 = vld [vmem:[%s714 + $0x1c] sm:$0xf]
    %v723 = vld [vmem:[%s714 + $0x20] sm:$0xf]
    %v724 = vld [vmem:[%s714 + $0x24] sm:$0xf]
    %v725 = vld [vmem:[%s714 + $0x28] sm:$0xf]
    %v726 = vld [vmem:[%s714 + $0x2c] sm:$0xf]
    %v727 = vld [vmem:[%s714 + $0x30] sm:$0xf]
    %v728 = vld [vmem:[%s714 + $0x34] sm:$0xf]
    %v729 = vld [vmem:[%s714 + $0x38] sm:$0xf]
    %v730 = vld [vmem:[%s714 + $0x3c] sm:$0xf]
    %s731 = scalar_lea.vmem [#allocation10], 2
    %v732 = vld [vmem:[%s731] sm:$0x1]
    %v734 = vperm.slane %v732, 0
    %v752 = vunpack.c.l.b16 %v715
    %v753 = vunpack.c.l.b16 %v716
    %v754 = vunpack.c.l.b16 %v717
    %v755 = vunpack.c.l.b16 %v718
    %v756 = vunpack.c.l.b16 %v719
    %v757 = vunpack.c.l.b16 %v720
    %v758 = vunpack.c.l.b16 %v721
    %v759 = vunpack.c.l.b16 %v722
    %v760 = vunpack.c.l.b16 %v723
    %v761 = vunpack.c.l.b16 %v724
    %v762 = vunpack.c.l.b16 %v725
    %v763 = vunpack.c.l.b16 %v726
    %v764 = vunpack.c.l.b16 %v727
    %v765 = vunpack.c.l.b16 %v728
    %v766 = vunpack.c.l.b16 %v729
    %v767 = vunpack.c.l.b16 %v730
    %v768 = vpack.c.b16 %v753, %v752
    %v769 = vpack.c.b16 %v755, %v754
    %v770 = vpack.c.b16 %v757, %v756
    %v771 = vpack.c.b16 %v759, %v758
    %v772 = vpack.c.b16 %v761, %v760
    %v773 = vpack.c.b16 %v763, %v762
    %v774 = vpack.c.b16 %v765, %v764
    %v775 = vpack.c.b16 %v767, %v766
    %784 = vmatpush.bf16.msra.mxu0 %v775
    %785 = vmatpush.bf16.msra.mxu0 %v774
    %786 = vmatpush.bf16.msra.mxu0 %v773
    %787 = vmatpush.bf16.msra.mxu0 %v772
    %788 = vmatpush.bf16.msra.mxu0 %v771
    %789 = vmatpush.bf16.msra.mxu0 %v770
    %790 = vmatpush.bf16.msra.mxu0 %v769
    %791 = vmatpush.bf16.msra.mxu0 %v768
    %792 = vmatmul.bf16.gmra.mxu0 %v713
    %v793 = vpop.f32.mrf.mxu0
    %v794 = vadd.f32 %v734, %v793
    %v795 = vpop.f32.mrf.mxu0
    %796 = vdwg.mxu0
    %v797 = vmax.f32 %v794, 0.0
    %v798 = vpack.c.bf16 %v797, %v797
    %s799 = scalar_lea.vmem [#allocation11], 128
    %v800 = vld [vmem:[%s799] sm:$0xf]
    %v801 = vld [vmem:[%s799 + $0x4] sm:$0xf]
    %v802 = vld [vmem:[%s799 + $0x8] sm:$0xf]
    %v803 = vld [vmem:[%s799 + $0xc] sm:$0xf]
    %v804 = vld [vmem:[%s799 + $0x10] sm:$0xf]
    %v805 = vld [vmem:[%s799 + $0x14] sm:$0xf]
    %v806 = vld [vmem:[%s799 + $0x18] sm:$0xf]
    %v807 = vld [vmem:[%s799 + $0x1c] sm:$0xf]
    %v808 = vld [vmem:[%s799 + $0x20] sm:$0xf]
    %v809 = vld [vmem:[%s799 + $0x24] sm:$0xf]
    %v810 = vld [vmem:[%s799 + $0x28] sm:$0xf]
    %v811 = vld [vmem:[%s799 + $0x2c] sm:$0xf]
    %v812 = vld [vmem:[%s799 + $0x30] sm:$0xf]
    %v813 = vld [vmem:[%s799 + $0x34] sm:$0xf]
    %v814 = vld [vmem:[%s799 + $0x38] sm:$0xf]
    %v815 = vld [vmem:[%s799 + $0x3c] sm:$0xf]
    %s816 = scalar_lea.vmem %s6, 2
    %v817 = vld [vmem:[%s816] sm:$0x1]
    %v819 = vperm.slane %v817, 0
    %v837 = vunpack.c.l.b16 %v800
    %v838 = vunpack.c.l.b16 %v801
    %v839 = vunpack.c.l.b16 %v802
    %v840 = vunpack.c.l.b16 %v803
    %v841 = vunpack.c.l.b16 %v804
    %v842 = vunpack.c.l.b16 %v805
    %v843 = vunpack.c.l.b16 %v806
    %v844 = vunpack.c.l.b16 %v807
    %v845 = vunpack.c.l.b16 %v808
    %v846 = vunpack.c.l.b16 %v809
    %v847 = vunpack.c.l.b16 %v810
    %v848 = vunpack.c.l.b16 %v811
    %v849 = vunpack.c.l.b16 %v812
    %v850 = vunpack.c.l.b16 %v813
    %v851 = vunpack.c.l.b16 %v814
    %v852 = vunpack.c.l.b16 %v815
    %v853 = vpack.c.b16 %v838, %v837
    %v854 = vpack.c.b16 %v840, %v839
    %v855 = vpack.c.b16 %v842, %v841
    %v856 = vpack.c.b16 %v844, %v843
    %v857 = vpack.c.b16 %v846, %v845
    %v858 = vpack.c.b16 %v848, %v847
    %v859 = vpack.c.b16 %v850, %v849
    %v860 = vpack.c.b16 %v852, %v851
    %869 = vmatpush.bf16.msra.mxu0 %v860
    %870 = vmatpush.bf16.msra.mxu0 %v859
    %871 = vmatpush.bf16.msra.mxu0 %v858
    %872 = vmatpush.bf16.msra.mxu0 %v857
    %873 = vmatpush.bf16.msra.mxu0 %v856
    %874 = vmatpush.bf16.msra.mxu0 %v855
    %875 = vmatpush.bf16.msra.mxu0 %v854
    %876 = vmatpush.bf16.msra.mxu0 %v853
    %877 = vmatmul.bf16.gmra.mxu0 %v798
    %v878 = vpop.f32.mrf.mxu0
    %v879 = vadd.f32 %v819, %v878
    %v880 = vpop.f32.mrf.mxu0
    %881 = vdwg.mxu0
    %v882 = vadd.f32 %v372, %v879
    %v883 = vpack.c.bf16 %v882, %v882
    %s884 = scalar_lea.vmem [#allocation5], 192
    %v885 = vld [vmem:[%s884] sm:$0xf]
    %v886 = vld [vmem:[%s884 + $0x4] sm:$0xf]
    %v887 = vld [vmem:[%s884 + $0x8] sm:$0xf]
    %v888 = vld [vmem:[%s884 + $0xc] sm:$0xf]
    %v889 = vld [vmem:[%s884 + $0x10] sm:$0xf]
    %v890 = vld [vmem:[%s884 + $0x14] sm:$0xf]
    %v891 = vld [vmem:[%s884 + $0x18] sm:$0xf]
    %v892 = vld [vmem:[%s884 + $0x1c] sm:$0xf]
    %v893 = vld [vmem:[%s884 + $0x20] sm:$0xf]
    %v894 = vld [vmem:[%s884 + $0x24] sm:$0xf]
    %v895 = vld [vmem:[%s884 + $0x28] sm:$0xf]
    %v896 = vld [vmem:[%s884 + $0x2c] sm:$0xf]
    %v897 = vld [vmem:[%s884 + $0x30] sm:$0xf]
    %v898 = vld [vmem:[%s884 + $0x34] sm:$0xf]
    %v899 = vld [vmem:[%s884 + $0x38] sm:$0xf]
    %v900 = vld [vmem:[%s884 + $0x3c] sm:$0xf]
    %s901 = scalar_lea.vmem [#allocation7], 3
    %v902 = vld [vmem:[%s901] sm:$0x1]
    %v904 = vperm.slane %v902, 0
    %v922 = vunpack.c.l.b16 %v885
    %v923 = vunpack.c.l.b16 %v886
    %v924 = vunpack.c.l.b16 %v887
    %v925 = vunpack.c.l.b16 %v888
    %v926 = vunpack.c.l.b16 %v889
    %v927 = vunpack.c.l.b16 %v890
    %v928 = vunpack.c.l.b16 %v891
    %v929 = vunpack.c.l.b16 %v892
    %v930 = vunpack.c.l.b16 %v893
    %v931 = vunpack.c.l.b16 %v894
    %v932 = vunpack.c.l.b16 %v895
    %v933 = vunpack.c.l.b16 %v896
    %v934 = vunpack.c.l.b16 %v897
    %v935 = vunpack.c.l.b16 %v898
    %v936 = vunpack.c.l.b16 %v899
    %v937 = vunpack.c.l.b16 %v900
    %v938 = vpack.c.b16 %v923, %v922
    %v939 = vpack.c.b16 %v925, %v924
    %v940 = vpack.c.b16 %v927, %v926
    %v941 = vpack.c.b16 %v929, %v928
    %v942 = vpack.c.b16 %v931, %v930
    %v943 = vpack.c.b16 %v933, %v932
    %v944 = vpack.c.b16 %v935, %v934
    %v945 = vpack.c.b16 %v937, %v936
    %954 = vmatpush.bf16.msra.mxu0 %v945
    %955 = vmatpush.bf16.msra.mxu0 %v944
    %956 = vmatpush.bf16.msra.mxu0 %v943
    %957 = vmatpush.bf16.msra.mxu0 %v942
    %958 = vmatpush.bf16.msra.mxu0 %v941
    %959 = vmatpush.bf16.msra.mxu0 %v940
    %960 = vmatpush.bf16.msra.mxu0 %v939
    %961 = vmatpush.bf16.msra.mxu0 %v938
    %962 = vmatmul.bf16.gmra.mxu0 %v883
    %v963 = vpop.f32.mrf.mxu0
    %v964 = vadd.f32 %v904, %v963
    %v965 = vpop.f32.mrf.mxu0
    %966 = vdwg.mxu0
    %v967 = vmax.f32 %v964, 0.0
    %v968 = vpack.c.bf16 %v967, %v967
    %s969 = scalar_lea.vmem [#allocation8], 192
    %v970 = vld [vmem:[%s969] sm:$0xf]
    %v971 = vld [vmem:[%s969 + $0x4] sm:$0xf]
    %v972 = vld [vmem:[%s969 + $0x8] sm:$0xf]
    %v973 = vld [vmem:[%s969 + $0xc] sm:$0xf]
    %v974 = vld [vmem:[%s969 + $0x10] sm:$0xf]
    %v975 = vld [vmem:[%s969 + $0x14] sm:$0xf]
    %v976 = vld [vmem:[%s969 + $0x18] sm:$0xf]
    %v977 = vld [vmem:[%s969 + $0x1c] sm:$0xf]
    %v978 = vld [vmem:[%s969 + $0x20] sm:$0xf]
    %v979 = vld [vmem:[%s969 + $0x24] sm:$0xf]
    %v980 = vld [vmem:[%s969 + $0x28] sm:$0xf]
    %v981 = vld [vmem:[%s969 + $0x2c] sm:$0xf]
    %v982 = vld [vmem:[%s969 + $0x30] sm:$0xf]
    %v983 = vld [vmem:[%s969 + $0x34] sm:$0xf]
    %v984 = vld [vmem:[%s969 + $0x38] sm:$0xf]
    %v985 = vld [vmem:[%s969 + $0x3c] sm:$0xf]
    %s986 = scalar_lea.vmem [#allocation10], 3
    %v987 = vld [vmem:[%s986] sm:$0x1]
    %v989 = vperm.slane %v987, 0
    %v1007 = vunpack.c.l.b16 %v970
    %v1008 = vunpack.c.l.b16 %v971
    %v1009 = vunpack.c.l.b16 %v972
    %v1010 = vunpack.c.l.b16 %v973
    %v1011 = vunpack.c.l.b16 %v974
    %v1012 = vunpack.c.l.b16 %v975
    %v1013 = vunpack.c.l.b16 %v976
    %v1014 = vunpack.c.l.b16 %v977
    %v1015 = vunpack.c.l.b16 %v978
    %v1016 = vunpack.c.l.b16 %v979
    %v1017 = vunpack.c.l.b16 %v980
    %v1018 = vunpack.c.l.b16 %v981
    %v1019 = vunpack.c.l.b16 %v982
    %v1020 = vunpack.c.l.b16 %v983
    %v1021 = vunpack.c.l.b16 %v984
    %v1022 = vunpack.c.l.b16 %v985
    %v1023 = vpack.c.b16 %v1008, %v1007
    %v1024 = vpack.c.b16 %v1010, %v1009
    %v1025 = vpack.c.b16 %v1012, %v1011
    %v1026 = vpack.c.b16 %v1014, %v1013
    %v1027 = vpack.c.b16 %v1016, %v1015
    %v1028 = vpack.c.b16 %v1018, %v1017
    %v1029 = vpack.c.b16 %v1020, %v1019
    %v1030 = vpack.c.b16 %v1022, %v1021
    %1039 = vmatpush.bf16.msra.mxu0 %v1030
    %1040 = vmatpush.bf16.msra.mxu0 %v1029
    %1041 = vmatpush.bf16.msra.mxu0 %v1028
    %1042 = vmatpush.bf16.msra.mxu0 %v1027
    %1043 = vmatpush.bf16.msra.mxu0 %v1026
    %1044 = vmatpush.bf16.msra.mxu0 %v1025
    %1045 = vmatpush.bf16.msra.mxu0 %v1024
    %1046 = vmatpush.bf16.msra.mxu0 %v1023
    %1047 = vmatmul.bf16.gmra.mxu0 %v968
    %v1048 = vpop.f32.mrf.mxu0
    %v1049 = vadd.f32 %v989, %v1048
    %v1050 = vpop.f32.mrf.mxu0
    %1051 = vdwg.mxu0
    %v1052 = vmax.f32 %v1049, 0.0
    %v1053 = vpack.c.bf16 %v1052, %v1052
    %s1054 = scalar_lea.vmem [#allocation11], 192
    %v1055 = vld [vmem:[%s1054] sm:$0xf]
    %v1056 = vld [vmem:[%s1054 + $0x4] sm:$0xf]
    %v1057 = vld [vmem:[%s1054 + $0x8] sm:$0xf]
    %v1058 = vld [vmem:[%s1054 + $0xc] sm:$0xf]
    %v1059 = vld [vmem:[%s1054 + $0x10] sm:$0xf]
    %v1060 = vld [vmem:[%s1054 + $0x14] sm:$0xf]
    %v1061 = vld [vmem:[%s1054 + $0x18] sm:$0xf]
    %v1062 = vld [vmem:[%s1054 + $0x1c] sm:$0xf]
    %v1063 = vld [vmem:[%s1054 + $0x20] sm:$0xf]
    %v1064 = vld [vmem:[%s1054 + $0x24] sm:$0xf]
    %v1065 = vld [vmem:[%s1054 + $0x28] sm:$0xf]
    %v1066 = vld [vmem:[%s1054 + $0x2c] sm:$0xf]
    %v1067 = vld [vmem:[%s1054 + $0x30] sm:$0xf]
    %v1068 = vld [vmem:[%s1054 + $0x34] sm:$0xf]
    %v1069 = vld [vmem:[%s1054 + $0x38] sm:$0xf]
    %v1070 = vld [vmem:[%s1054 + $0x3c] sm:$0xf]
    %s1071 = scalar_lea.vmem %s6, 3
    %v1072 = vld [vmem:[%s1071] sm:$0x1]
    %v1074 = vperm.slane %v1072, 0
    %v1092 = vunpack.c.l.b16 %v1055
    %v1093 = vunpack.c.l.b16 %v1056
    %v1094 = vunpack.c.l.b16 %v1057
    %v1095 = vunpack.c.l.b16 %v1058
    %v1096 = vunpack.c.l.b16 %v1059
    %v1097 = vunpack.c.l.b16 %v1060
    %v1098 = vunpack.c.l.b16 %v1061
    %v1099 = vunpack.c.l.b16 %v1062
    %v1100 = vunpack.c.l.b16 %v1063
    %v1101 = vunpack.c.l.b16 %v1064
    %v1102 = vunpack.c.l.b16 %v1065
    %v1103 = vunpack.c.l.b16 %v1066
    %v1104 = vunpack.c.l.b16 %v1067
    %v1105 = vunpack.c.l.b16 %v1068
    %v1106 = vunpack.c.l.b16 %v1069
    %v1107 = vunpack.c.l.b16 %v1070
    %v1108 = vpack.c.b16 %v1093, %v1092
    %v1109 = vpack.c.b16 %v1095, %v1094
    %v1110 = vpack.c.b16 %v1097, %v1096
    %v1111 = vpack.c.b16 %v1099, %v1098
    %v1112 = vpack.c.b16 %v1101, %v1100
    %v1113 = vpack.c.b16 %v1103, %v1102
    %v1114 = vpack.c.b16 %v1105, %v1104
    %v1115 = vpack.c.b16 %v1107, %v1106
    %1124 = vmatpush.bf16.msra.mxu0 %v1115
    %1125 = vmatpush.bf16.msra.mxu0 %v1114
    %1126 = vmatpush.bf16.msra.mxu0 %v1113
    %1127 = vmatpush.bf16.msra.mxu0 %v1112
    %1128 = vmatpush.bf16.msra.mxu0 %v1111
    %1129 = vmatpush.bf16.msra.mxu0 %v1110
    %1130 = vmatpush.bf16.msra.mxu0 %v1109
    %1131 = vmatpush.bf16.msra.mxu0 %v1108
    %1132 = vmatmul.bf16.gmra.mxu0 %v1053
    %v1133 = vpop.f32.mrf.mxu0
    %v1134 = vadd.f32 %v1074, %v1133
    %v1135 = vpop.f32.mrf.mxu0
    %1136 = vdwg.mxu0
    %v1137 = vadd.f32 %v627, %v1134
    %v1138 = vld [vmem:[%s7] sm:$0x1]
    %v1140 = vperm.slane %v1138, 0
    %v1142 = vmul.f32 %v1137, %v1140
    %1143 = vst [vmem:[#allocation13] sm:$0xff] %v1142
    %v1144 = vld [vmem:[%s7 + $0x1] sm:$0x1]
    %v1146 = vperm.slane %v1144, 0
    %v1148 = vmul.f32 %v882, %v1146
    %1149 = vst [vmem:[#allocation13 + $0x8] sm:$0xff] %v1148
    // Predicated region
    $region58: #{tpu_custom_call.1} parent=1 // pred_check
      _
    $region59: #{tpu_custom_call.1} parent=1 // pred_check_branch
      %1151 = sbr.rel (0) target = $region61
    $region60: #{tpu_custom_call.1} parent=1 // pred_region
      %1153 = vsyncadd [#allocation4], 0
      %s1155 = sshll.u32 [#allocation13], 4
      %s1156 = int_to_ptr.vmem [resolvable:$true] %s1155
      %s1157 = sshll.u32 %s8, 4
      %s1158 = int_to_ptr.hbm [resolvable:$true] %s1157
      %1160 = dma.vmem_to_hbm [thread:$0]  %s1156, 256, %s1158, [#allocation4]
    $region61: #{tpu_custom_call.1} parent=1 // pred_fallthru
      _
    // Predicated region
    $region62: #{tpu_custom_call.1} parent=1 // pred_check
      _
    $region63: #{tpu_custom_call.1} parent=1 // pred_check_branch
      %1162 = sbr.rel (0) target = $region65
    $region64: #{tpu_custom_call.1} parent=1 // pred_region
      %1164 = dma.done [#allocation4], 256
    $region65: #{tpu_custom_call.1} parent=1 // pred_fallthru
      _
    %1165 = vsyncpa [#allocation3], 1
    %1166 = vsyncpa [#allocation6], 1
    %1167 = vsyncpa [#allocation9], 1
    %1168 = vsyncpa [#allocation12], 1
    %1169 = vsyncpa [#allocation4], 1

</llo_original>
